<compile_context>
chip_gen: v7x
topology: tpu7x:2x2x1
jax: 0.10.0
libtpu: 0.0.40
codegen_flags: <defaults>
</compile_context>

<pallas_src>
import functools

import jax
import jax.numpy as jnp
from jax.experimental import pallas as pl
from jax.experimental.pallas import tpu as pltpu


# ----------------------------------------------------------------------------
# Pallas kernel: the entire forward pass (everything fits VMEM at these sizes).
# ----------------------------------------------------------------------------
def gnn_forward_kernel(
    # data
    x_ref,        # [N, Fx]     raw node features (f32)
    eattr_ref,    # [E, Fe]     selected edge features (f32)
    gattr_ref,    # [G, Fg]     selected graph features (f32)
    src_oh_ref,   # [E, N]      one-hot of edge source node (bf16, exact)
    dst_oh_ref,   # [N, E]      one-hot of edge destination node (bf16, exact)
    member_ref,   # [G, N]      0/1 graph membership (bf16, exact)
    invcnt_ref,   # [G, 1]      1 / nodes-per-graph (f32)
    # weights (bf16, f32 accumulation via preferred_element_type)
    w_enc_ref,    # [Fx+Fe, H]  rows 0..Fx-1: node encoder, rows Fx..: edge encoder
    cw1_ref,      # [3, H, 2H]  conv MLP lin1 with eval-BN scale folded in
    cw2_ref,      # [3, 2H, H]  conv MLP lin2
    w_head_ref,   # [H+Fg+D, D] rows: dense1(x-part), dense1(g-part), dense2
    w_out_ref,    # [D, Y]
    # packed biases (f32)
    bias_h_ref,   # [5, H]      rows: b_node_enc, b_edge_enc, conv_lin2 bias x3
    bias_2h_ref,  # [3, 2H]     conv_lin1 bias fused with eval-BN (per layer)
    bias_d_ref,   # [2, D]      rows: b_dense1, b_dense2
    b_out_ref,    # [1, Y]
    # output
    out_ref,      # [G, Y]
):
    f32 = jnp.float32
    bf16 = jnp.bfloat16
    dot = functools.partial(jnp.dot, preferred_element_type=f32)
    eps = jnp.float32(1e-7)   # GENConv message epsilon

    Fx = x_ref.shape[1]
    Fe = eattr_ref.shape[1]
    Fg = gattr_ref.shape[1]
    H = w_enc_ref.shape[1]
    D = w_head_ref.shape[1]

    src_oh = src_oh_ref[...]                                     # [E, N] bf16
    dst_oh = dst_oh_ref[...]                                     # [N, E] bf16

    # ---- encoders (bf16 matmuls, f32 accumulate + f32 bias) ----
    w_ne = w_enc_ref[0:Fx, :]                                    # [Fx, H] bf16
    w_ee = w_enc_ref[Fx:Fx + Fe, :]                              # [Fe, H] bf16
    h = dot(x_ref[...].astype(bf16), w_ne) + bias_h_ref[0:1, :]      # [N, H] f32
    e = dot(eattr_ref[...].astype(bf16), w_ee) + bias_h_ref[1:2, :]  # [E, H] f32

    # ---- 3 x GENConv (softmax aggregation, t=1) + outer ReLU ----
    for i in range(3):
        # message: relu(x_j + edge_attr) + eps
        x_j = dot(src_oh, h.astype(bf16))                        # gather src nodes [E, H]
        msg = jnp.maximum(x_j + e, 0.0) + eps                    # [E, H], strictly > 0

        # scatter-softmax over edges grouped by destination node (per channel):
        #   aggr[n] = sum_{e->n} msg*exp / sum_{e->n} exp
        # Both reductions fused into ONE dst_oh matmul by concatenating operands
        # along the lane axis ([E, 2H]).
        m = jnp.max(msg, axis=0, keepdims=True)                  # [1, H] global shift
        exp_msg = jnp.exp(msg - m)                               # [E, H]
        cat = jnp.concatenate([exp_msg, msg * exp_msg], axis=1)  # [E, 2H]
        agg = dot(dst_oh, cat.astype(bf16))                      # [N, 2H] f32
        denom = agg[:, 0:H]                                      # [N, H]
        num = agg[:, H:2 * H]                                    # [N, H]
        inv = pl.reciprocal(jnp.maximum(denom, eps), approx=True)
        aggr = num * inv                                         # [N, H] (0 for isolated nodes)

        # residual + MLP (Lin(+fused eval-BN) -> ReLU -> Lin)
        out = aggr + h                                           # [N, H]
        y = dot(out.astype(bf16), cw1_ref[i]) + bias_2h_ref[i:i + 1, :]   # [N, 2H]
        y = jnp.maximum(y, 0.0)
        y = dot(y.astype(bf16), cw2_ref[i]) + bias_h_ref[2 + i:3 + i, :]  # [N, H]
        h = jnp.maximum(y, 0.0)                                  # outer F.relu

    # ---- global mean pool + concat(graph_attr) + dense head ----
    pooled = dot(member_ref[...], h.astype(bf16)) * invcnt_ref[...]   # [G, H]
    # dense1 over concat([pooled, graph_attr]) as ONE matmul against the packed head.
    cat_g = jnp.concatenate([pooled, gattr_ref[...]], axis=1)          # [G, H+Fg]
    d1 = dot(cat_g.astype(bf16), w_head_ref[0:H + Fg, :]) + bias_d_ref[0:1, :]
    d1 = jnp.maximum(d1, 0.0)                                          # [G, D]
    d2 = dot(d1.astype(bf16), w_head_ref[H + Fg:H + Fg + D, :]) + bias_d_ref[1:2, :]
    d2 = jnp.maximum(d2, 0.0)                                          # [G, D]
    logits = dot(d2.astype(bf16), w_out_ref[...]) + b_out_ref[...]     # [G, Y]
    out_ref[...] = jax.nn.sigmoid(logits)


# ----------------------------------------------------------------------------
# Wrapper: parameter packing + graph-structure -> dense matrices, then pallas_call.
# ----------------------------------------------------------------------------
def net_forward(x, edge_index, edge_attr, graph_attr, batch,
                edge_list, global_list, params):
    f32 = jnp.float32
    bf16 = jnp.bfloat16
    N = x.shape[0]
    G = graph_attr.shape[0]
    Y = params["w_out"].shape[1]
    H = params["w_ne"].shape[1]

    # glue: feature selection, one-hot scatter/gather matrices, mean-pool pieces.
    # one-hots / membership are exact in bf16 -> halve their DMA bytes and keep
    # the structure matmuls on the single-pass bf16 MXU path.
    eattr = edge_attr[:, jnp.asarray(edge_list)].astype(f32)                   # [E, Fe]
    gattr = graph_attr[:, jnp.asarray(global_list)].astype(f32)                # [G, Fg]
    src_oh = (edge_index[0][:, None] == jnp.arange(N)[None, :]).astype(bf16)   # [E, N]
    dst_oh = (jnp.arange(N)[:, None] == edge_index[1][None, :]).astype(bf16)   # [N, E]
    member_f32 = (jnp.arange(G)[:, None] == batch[None, :]).astype(f32)        # [G, N]
    inv_counts = 1.0 / jnp.maximum(member_f32.sum(axis=1, keepdims=True), 1.0)  # [G, 1]
    member = member_f32.astype(bf16)

    # fold eval-mode BatchNorm (scale/bias) into the conv-MLP first linear.
    cw1_fused = (params["cw1"] * params["cbs"]).astype(bf16)                   # [3,H,2H]
    cb1_fused = params["cb1"] * params["cbs"] + params["cbb"]                  # [3,1,2H]

    # pack weights (bf16) and the many tiny bias vectors (f32) into a few arrays.
    w_enc = jnp.concatenate([params["w_ne"], params["w_ee"]], axis=0).astype(bf16)
    w_head = jnp.concatenate(
        [params["w_d1x"], params["w_d1g"], params["w_d2"]], axis=0).astype(bf16)
    bias_h = jnp.concatenate(
        [params["b_ne"], params["b_ee"], params["cb2"].reshape(3, H)], axis=0)  # [5, H]
    bias_2h = cb1_fused.reshape(3, 2 * H)                                       # [3, 2H]
    bias_d = jnp.concatenate([params["b_d1"], params["b_d2"]], axis=0)          # [2, D]

    inputs = (
        x.astype(f32), eattr, gattr, src_oh, dst_oh, member, inv_counts,
        w_enc, cw1_fused, params["cw2"].astype(bf16), w_head,
        params["w_out"].astype(bf16),
        bias_h, bias_2h, bias_d, params["b_out"],
    )

    # explicit scoped-VMEM budget sized from the actual buffer footprint
    # (inputs + output + generous headroom for activations / padding), capped at
    # 64 MiB so the same code stays safe on v7x.
    total_bytes = sum(int(a.size) * a.dtype.itemsize for a in inputs) + G * Y * 4
    vmem_limit = int(min(64 * 1024 * 1024, max(8 * 1024 * 1024, 8 * total_bytes)))

    vmem_spec = pl.BlockSpec(memory_space=pltpu.MemorySpace.VMEM)
    return pl.pallas_call(
        gnn_forward_kernel,
        out_shape=jax.ShapeDtypeStruct((G, Y), f32),
        in_specs=[vmem_spec] * len(inputs),
        out_specs=vmem_spec,
        compiler_params=pltpu.CompilerParams(vmem_limit_bytes=vmem_limit),
    )(*inputs)


# ----------------------------------------------------------------------------
# Deterministic parameter construction (shapes follow the module's __init__).
# ----------------------------------------------------------------------------
def make_params(key, node_feat, n_edge_sel, n_glob_sel, hidden, dense, y_dim):
    f32 = jnp.float32
    ks = iter(jax.random.split(key, 64))

    def lin(fan_in, fan_out):
        bound = 1.0 / jnp.sqrt(jnp.float32(fan_in))
        w = jax.random.uniform(next(ks), (fan_in, fan_out), f32, -bound, bound)
        b = jax.random.uniform(next(ks), (1, fan_out), f32, -bound, bound)
        return w, b

    p = {}
    p["w_ne"], p["b_ne"] = lin(node_feat, hidden)
    p["w_ee"], p["b_ee"] = lin(n_edge_sel, hidden)

    # three GENConv MLPs: Lin(H->2H) -> BatchNorm1d(2H, eval) -> ReLU -> Lin(2H->H)
    cw1, cb1, cbs, cbb, cw2, cb2 = [], [], [], [], [], []
    for _ in range(3):
        w1, b1 = lin(hidden, 2 * hidden)
        w2, b2 = lin(2 * hidden, hidden)
        gamma = 1.0 + 0.05 * jax.random.normal(next(ks), (1, 2 * hidden), f32)
        beta = 0.05 * jax.random.normal(next(ks), (1, 2 * hidden), f32)
        run_mean = jnp.zeros((1, 2 * hidden), f32)
        run_var = jnp.ones((1, 2 * hidden), f32)
        scale = gamma / jnp.sqrt(run_var + 1e-5)
        bias = beta - run_mean * scale
        cw1.append(w1); cb1.append(b1); cbs.append(scale); cbb.append(bias)
        cw2.append(w2); cb2.append(b2)
    p["cw1"] = jnp.stack(cw1); p["cb1"] = jnp.stack(cb1)
    p["cbs"] = jnp.stack(cbs); p["cbb"] = jnp.stack(cbb)
    p["cw2"] = jnp.stack(cw2); p["cb2"] = jnp.stack(cb2)

    # dense1 acts on concat([pooled, graph_attr]) -> split weight into two blocks
    w_d1, b_d1 = lin(hidden + n_glob_sel, dense)
    p["w_d1x"], p["w_d1g"], p["b_d1"] = w_d1[:hidden], w_d1[hidden:], b_d1
    p["w_d2"], p["b_d2"] = lin(dense, dense)
    p["w_out"], p["b_out"] = lin(dense, y_dim)
    return p


if __name__ == "__main__":
    # small, deterministic synthetic graph batch
    N, E, G = 16, 32, 2                 # nodes, edges, graphs
    NODE_FEAT = 8
    EDGE_FEAT_RAW, GRAPH_FEAT_RAW = 6, 5
    EDGE_LIST = [0, 2, 3, 5]            # len 4 -> edge_encoder in_features
    GLOBAL_LIST = [1, 3, 4]             # len 3
    HIDDEN, DENSE, Y_DIM = 32, 32, 2

    key = jax.random.PRNGKey(0)
    k_x, k_ea, k_ga, k_src, k_dst, k_p = jax.random.split(key, 6)

    x = jax.random.normal(k_x, (N, NODE_FEAT), jnp.float32)
    edge_attr = jax.random.normal(k_ea, (E, EDGE_FEAT_RAW), jnp.float32)
    graph_attr = jax.random.normal(k_ga, (G, GRAPH_FEAT_RAW), jnp.float32)

    # nodes 0..7 -> graph 0, nodes 8..15 -> graph 1; edges stay within a graph
    batch = jnp.concatenate([jnp.zeros(8, jnp.int32), jnp.ones(8, jnp.int32)])
    src0 = jax.random.randint(k_src, (E // 2,), 0, 8)
    dst0 = jax.random.randint(k_dst, (E // 2,), 0, 8)
    src1 = jax.random.randint(jax.random.fold_in(k_src, 1), (E // 2,), 8, 16)
    dst1 = jax.random.randint(jax.random.fold_in(k_dst, 1), (E // 2,), 8, 16)
    edge_index = jnp.stack([jnp.concatenate([src0, src1]),
                            jnp.concatenate([dst0, dst1])]).astype(jnp.int32)

    params = make_params(k_p, NODE_FEAT, len(EDGE_LIST), len(GLOBAL_LIST),
                         HIDDEN, DENSE, Y_DIM)

    out = net_forward(x, edge_index, edge_attr, graph_attr, batch,
                      EDGE_LIST, GLOBAL_LIST, params)
    out = jax.block_until_ready(out)

    assert out.shape == (G, Y_DIM)
    assert bool(jnp.all(jnp.isfinite(out)))
    assert bool(jnp.all((out >= 0.0) & (out <= 1.0)))
    print("KERNEL_OK")
</pallas_src>

<mosaic_0001>
module attributes {stable_mosaic.version = 11 : i64} {
  func.func @gnn_forward_kernel(%arg0: memref<16x8xf32, #tpu.memory_space<vmem>>, %arg1: memref<32x4xf32, #tpu.memory_space<vmem>>, %arg2: memref<2x3xf32, #tpu.memory_space<vmem>>, %arg3: memref<32x16xbf16, #tpu.memory_space<vmem>>, %arg4: memref<16x32xbf16, #tpu.memory_space<vmem>>, %arg5: memref<2x16xbf16, #tpu.memory_space<vmem>>, %arg6: memref<2x1xf32, #tpu.memory_space<vmem>>, %arg7: memref<12x32xbf16, #tpu.memory_space<vmem>>, %arg8: memref<3x32x64xbf16, #tpu.memory_space<vmem>>, %arg9: memref<3x64x32xbf16, #tpu.memory_space<vmem>>, %arg10: memref<67x32xbf16, #tpu.memory_space<vmem>>, %arg11: memref<32x2xbf16, #tpu.memory_space<vmem>>, %arg12: memref<5x32xf32, #tpu.memory_space<vmem>>, %arg13: memref<3x64xf32, #tpu.memory_space<vmem>>, %arg14: memref<2x32xf32, #tpu.memory_space<vmem>>, %arg15: memref<1x2xf32, #tpu.memory_space<vmem>>, %arg16: memref<2x2xf32, #tpu.memory_space<vmem>>) attributes {dimension_semantics = [], scalar_prefetch = 0 : i64, scratch_operands = 0 : i64, tpu.core_type = #tpu.core_type<tc>} {
    %c0 = arith.constant 0 : index
    %c0_0 = arith.constant 0 : index
    %0 = vector.load %arg3[%c0, %c0_0] : memref<32x16xbf16, #tpu.memory_space<vmem>>, vector<32x16xbf16>
    %c0_1 = arith.constant 0 : index
    %c0_2 = arith.constant 0 : index
    %1 = vector.load %arg4[%c0_1, %c0_2] : memref<16x32xbf16, #tpu.memory_space<vmem>>, vector<16x32xbf16>
    %c0_3 = arith.constant 0 : index
    %c0_4 = arith.constant 0 : index
    %2 = vector.load %arg7[%c0_3, %c0_4] : memref<12x32xbf16, #tpu.memory_space<vmem>>, vector<8x32xbf16>
    %c8 = arith.constant 8 : index
    %c0_5 = arith.constant 0 : index
    %3 = vector.load %arg7[%c8, %c0_5] : memref<12x32xbf16, #tpu.memory_space<vmem>>, vector<4x32xbf16>
    %c0_6 = arith.constant 0 : index
    %c0_7 = arith.constant 0 : index
    %4 = vector.load %arg0[%c0_6, %c0_7] : memref<16x8xf32, #tpu.memory_space<vmem>>, vector<16x8xf32>
    %5 = arith.truncf %4 : vector<16x8xf32> to vector<16x8xbf16>
    %cst = arith.constant dense<0.000000e+00> : vector<16x32xf32>
    %6 = tpu.matmul %5, %2, %cst {dimension_numbers = #tpu.dot_dimension_numbers<[1], [0], [0], [1], [0, 0, 1, 1], [], []>} : vector<16x8xbf16>, vector<8x32xbf16>, vector<16x32xf32> -> vector<16x32xf32>
    %c0_8 = arith.constant 0 : index
    %c0_9 = arith.constant 0 : index
    %7 = vector.load %arg12[%c0_8, %c0_9] : memref<5x32xf32, #tpu.memory_space<vmem>>, vector<1x32xf32>
    %8 = vector.broadcast %7 : vector<1x32xf32> to vector<16x32xf32>
    %9 = arith.addf %6, %8 : vector<16x32xf32>
    %c0_10 = arith.constant 0 : index
    %c0_11 = arith.constant 0 : index
    %10 = vector.load %arg1[%c0_10, %c0_11] : memref<32x4xf32, #tpu.memory_space<vmem>>, vector<32x4xf32>
    %11 = arith.truncf %10 : vector<32x4xf32> to vector<32x4xbf16>
    %cst_12 = arith.constant dense<0.000000e+00> : vector<32x32xf32>
    %12 = tpu.matmul %11, %3, %cst_12 {dimension_numbers = #tpu.dot_dimension_numbers<[1], [0], [0], [1], [0, 0, 1, 1], [], []>} : vector<32x4xbf16>, vector<4x32xbf16>, vector<32x32xf32> -> vector<32x32xf32>
    %c1 = arith.constant 1 : index
    %c0_13 = arith.constant 0 : index
    %13 = vector.load %arg12[%c1, %c0_13] : memref<5x32xf32, #tpu.memory_space<vmem>>, vector<1x32xf32>
    %14 = vector.broadcast %13 : vector<1x32xf32> to vector<32x32xf32>
    %15 = arith.addf %12, %14 : vector<32x32xf32>
    %16 = arith.truncf %9 : vector<16x32xf32> to vector<16x32xbf16>
    %cst_14 = arith.constant dense<0.000000e+00> : vector<32x32xf32>
    %17 = tpu.matmul %0, %16, %cst_14 {dimension_numbers = #tpu.dot_dimension_numbers<[1], [0], [0], [1], [0, 0, 1, 1], [], []>} : vector<32x16xbf16>, vector<16x32xbf16>, vector<32x32xf32> -> vector<32x32xf32>
    %18 = arith.addf %17, %15 : vector<32x32xf32>
    %cst_15 = arith.constant 0.000000e+00 : f32
    %19 = vector.broadcast %cst_15 : f32 to vector<32x32xf32>
    %20 = arith.maximumf %18, %19 : vector<32x32xf32>
    %cst_16 = arith.constant 1.000000e-07 : f32
    %21 = vector.broadcast %cst_16 : f32 to vector<32x32xf32>
    %22 = arith.addf %20, %21 : vector<32x32xf32>
    %cst_17 = arith.constant dense<0xFF800000> : vector<32xf32>
    %23 = vector.multi_reduction <maximumf>, %22, %cst_17 [0] : vector<32x32xf32> to vector<32xf32>
    %24 = vector.shape_cast %23 : vector<32xf32> to vector<1x32xf32>
    %25 = vector.broadcast %24 : vector<1x32xf32> to vector<32x32xf32>
    %26 = arith.subf %22, %25 : vector<32x32xf32>
    %27 = math.exp %26 : vector<32x32xf32>
    %28 = arith.mulf %22, %27 : vector<32x32xf32>
    %29 = tpu.concatenate %27, %28 in 1 : vector<32x32xf32>, vector<32x32xf32> -> vector<32x64xf32>
    %30 = arith.truncf %29 : vector<32x64xf32> to vector<32x64xbf16>
    %cst_18 = arith.constant dense<0.000000e+00> : vector<16x64xf32>
    %31 = tpu.matmul %1, %30, %cst_18 {dimension_numbers = #tpu.dot_dimension_numbers<[1], [0], [0], [1], [0, 0, 1, 1], [], []>} : vector<16x32xbf16>, vector<32x64xbf16>, vector<16x64xf32> -> vector<16x64xf32>
    %32 = vector.extract_strided_slice %31 {offsets = [0, 0], sizes = [16, 32], strides = [1, 1]} : vector<16x64xf32> to vector<16x32xf32>
    %33 = vector.extract_strided_slice %31 {offsets = [0, 32], sizes = [16, 32], strides = [1, 1]} : vector<16x64xf32> to vector<16x32xf32>
    %cst_19 = arith.constant 1.000000e-07 : f32
    %34 = vector.broadcast %cst_19 : f32 to vector<16x32xf32>
    %35 = arith.maximumf %32, %34 : vector<16x32xf32>
    %36 = tpu.reciprocal %35 {approx = true} : vector<16x32xf32> -> vector<16x32xf32>
    %37 = arith.mulf %33, %36 : vector<16x32xf32>
    %38 = arith.addf %37, %9 : vector<16x32xf32>
    %39 = arith.truncf %38 : vector<16x32xf32> to vector<16x32xbf16>
    %c0_20 = arith.constant 0 : index
    %c0_21 = arith.constant 0 : index
    %c0_22 = arith.constant 0 : index
    %40 = vector.load %arg8[%c0_20, %c0_21, %c0_22] : memref<3x32x64xbf16, #tpu.memory_space<vmem>>, vector<1x32x64xbf16>
    %41 = vector.shape_cast %40 : vector<1x32x64xbf16> to vector<32x64xbf16>
    %cst_23 = arith.constant dense<0.000000e+00> : vector<16x64xf32>
    %42 = tpu.matmul %39, %41, %cst_23 {dimension_numbers = #tpu.dot_dimension_numbers<[1], [0], [0], [1], [0, 0, 1, 1], [], []>} : vector<16x32xbf16>, vector<32x64xbf16>, vector<16x64xf32> -> vector<16x64xf32>
    %c0_24 = arith.constant 0 : index
    %c0_25 = arith.constant 0 : index
    %43 = vector.load %arg13[%c0_24, %c0_25] : memref<3x64xf32, #tpu.memory_space<vmem>>, vector<1x64xf32>
    %44 = vector.broadcast %43 : vector<1x64xf32> to vector<16x64xf32>
    %45 = arith.addf %42, %44 : vector<16x64xf32>
    %cst_26 = arith.constant 0.000000e+00 : f32
    %46 = vector.broadcast %cst_26 : f32 to vector<16x64xf32>
    %47 = arith.maximumf %45, %46 : vector<16x64xf32>
    %48 = arith.truncf %47 : vector<16x64xf32> to vector<16x64xbf16>
    %c0_27 = arith.constant 0 : index
    %c0_28 = arith.constant 0 : index
    %c0_29 = arith.constant 0 : index
    %49 = vector.load %arg9[%c0_27, %c0_28, %c0_29] : memref<3x64x32xbf16, #tpu.memory_space<vmem>>, vector<1x64x32xbf16>
    %50 = vector.shape_cast %49 : vector<1x64x32xbf16> to vector<64x32xbf16>
    %cst_30 = arith.constant dense<0.000000e+00> : vector<16x32xf32>
    %51 = tpu.matmul %48, %50, %cst_30 {dimension_numbers = #tpu.dot_dimension_numbers<[1], [0], [0], [1], [0, 0, 1, 1], [], []>} : vector<16x64xbf16>, vector<64x32xbf16>, vector<16x32xf32> -> vector<16x32xf32>
    %c2 = arith.constant 2 : index
    %c0_31 = arith.constant 0 : index
    %52 = vector.load %arg12[%c2, %c0_31] : memref<5x32xf32, #tpu.memory_space<vmem>>, vector<1x32xf32>
    %53 = vector.broadcast %52 : vector<1x32xf32> to vector<16x32xf32>
    %54 = arith.addf %51, %53 : vector<16x32xf32>
    %cst_32 = arith.constant 0.000000e+00 : f32
    %55 = vector.broadcast %cst_32 : f32 to vector<16x32xf32>
    %56 = arith.maximumf %54, %55 : vector<16x32xf32>
    %57 = arith.truncf %56 : vector<16x32xf32> to vector<16x32xbf16>
    %cst_33 = arith.constant dense<0.000000e+00> : vector<32x32xf32>
    %58 = tpu.matmul %0, %57, %cst_33 {dimension_numbers = #tpu.dot_dimension_numbers<[1], [0], [0], [1], [0, 0, 1, 1], [], []>} : vector<32x16xbf16>, vector<16x32xbf16>, vector<32x32xf32> -> vector<32x32xf32>
    %59 = arith.addf %58, %15 : vector<32x32xf32>
    %cst_34 = arith.constant 0.000000e+00 : f32
    %60 = vector.broadcast %cst_34 : f32 to vector<32x32xf32>
    %61 = arith.maximumf %59, %60 : vector<32x32xf32>
    %cst_35 = arith.constant 1.000000e-07 : f32
    %62 = vector.broadcast %cst_35 : f32 to vector<32x32xf32>
    %63 = arith.addf %61, %62 : vector<32x32xf32>
    %cst_36 = arith.constant dense<0xFF800000> : vector<32xf32>
    %64 = vector.multi_reduction <maximumf>, %63, %cst_36 [0] : vector<32x32xf32> to vector<32xf32>
    %65 = vector.shape_cast %64 : vector<32xf32> to vector<1x32xf32>
    %66 = vector.broadcast %65 : vector<1x32xf32> to vector<32x32xf32>
    %67 = arith.subf %63, %66 : vector<32x32xf32>
    %68 = math.exp %67 : vector<32x32xf32>
    %69 = arith.mulf %63, %68 : vector<32x32xf32>
    %70 = tpu.concatenate %68, %69 in 1 : vector<32x32xf32>, vector<32x32xf32> -> vector<32x64xf32>
    %71 = arith.truncf %70 : vector<32x64xf32> to vector<32x64xbf16>
    %cst_37 = arith.constant dense<0.000000e+00> : vector<16x64xf32>
    %72 = tpu.matmul %1, %71, %cst_37 {dimension_numbers = #tpu.dot_dimension_numbers<[1], [0], [0], [1], [0, 0, 1, 1], [], []>} : vector<16x32xbf16>, vector<32x64xbf16>, vector<16x64xf32> -> vector<16x64xf32>
    %73 = vector.extract_strided_slice %72 {offsets = [0, 0], sizes = [16, 32], strides = [1, 1]} : vector<16x64xf32> to vector<16x32xf32>
    %74 = vector.extract_strided_slice %72 {offsets = [0, 32], sizes = [16, 32], strides = [1, 1]} : vector<16x64xf32> to vector<16x32xf32>
    %cst_38 = arith.constant 1.000000e-07 : f32
    %75 = vector.broadcast %cst_38 : f32 to vector<16x32xf32>
    %76 = arith.maximumf %73, %75 : vector<16x32xf32>
    %77 = tpu.reciprocal %76 {approx = true} : vector<16x32xf32> -> vector<16x32xf32>
    %78 = arith.mulf %74, %77 : vector<16x32xf32>
    %79 = arith.addf %78, %56 : vector<16x32xf32>
    %80 = arith.truncf %79 : vector<16x32xf32> to vector<16x32xbf16>
    %c1_39 = arith.constant 1 : index
    %c0_40 = arith.constant 0 : index
    %c0_41 = arith.constant 0 : index
    %81 = vector.load %arg8[%c1_39, %c0_40, %c0_41] : memref<3x32x64xbf16, #tpu.memory_space<vmem>>, vector<1x32x64xbf16>
    %82 = vector.shape_cast %81 : vector<1x32x64xbf16> to vector<32x64xbf16>
    %cst_42 = arith.constant dense<0.000000e+00> : vector<16x64xf32>
    %83 = tpu.matmul %80, %82, %cst_42 {dimension_numbers = #tpu.dot_dimension_numbers<[1], [0], [0], [1], [0, 0, 1, 1], [], []>} : vector<16x32xbf16>, vector<32x64xbf16>, vector<16x64xf32> -> vector<16x64xf32>
    %c1_43 = arith.constant 1 : index
    %c0_44 = arith.constant 0 : index
    %84 = vector.load %arg13[%c1_43, %c0_44] : memref<3x64xf32, #tpu.memory_space<vmem>>, vector<1x64xf32>
    %85 = vector.broadcast %84 : vector<1x64xf32> to vector<16x64xf32>
    %86 = arith.addf %83, %85 : vector<16x64xf32>
    %cst_45 = arith.constant 0.000000e+00 : f32
    %87 = vector.broadcast %cst_45 : f32 to vector<16x64xf32>
    %88 = arith.maximumf %86, %87 : vector<16x64xf32>
    %89 = arith.truncf %88 : vector<16x64xf32> to vector<16x64xbf16>
    %c1_46 = arith.constant 1 : index
    %c0_47 = arith.constant 0 : index
    %c0_48 = arith.constant 0 : index
    %90 = vector.load %arg9[%c1_46, %c0_47, %c0_48] : memref<3x64x32xbf16, #tpu.memory_space<vmem>>, vector<1x64x32xbf16>
    %91 = vector.shape_cast %90 : vector<1x64x32xbf16> to vector<64x32xbf16>
    %cst_49 = arith.constant dense<0.000000e+00> : vector<16x32xf32>
    %92 = tpu.matmul %89, %91, %cst_49 {dimension_numbers = #tpu.dot_dimension_numbers<[1], [0], [0], [1], [0, 0, 1, 1], [], []>} : vector<16x64xbf16>, vector<64x32xbf16>, vector<16x32xf32> -> vector<16x32xf32>
    %c3 = arith.constant 3 : index
    %c0_50 = arith.constant 0 : index
    %93 = vector.load %arg12[%c3, %c0_50] : memref<5x32xf32, #tpu.memory_space<vmem>>, vector<1x32xf32>
    %94 = vector.broadcast %93 : vector<1x32xf32> to vector<16x32xf32>
    %95 = arith.addf %92, %94 : vector<16x32xf32>
    %cst_51 = arith.constant 0.000000e+00 : f32
    %96 = vector.broadcast %cst_51 : f32 to vector<16x32xf32>
    %97 = arith.maximumf %95, %96 : vector<16x32xf32>
    %98 = arith.truncf %97 : vector<16x32xf32> to vector<16x32xbf16>
    %cst_52 = arith.constant dense<0.000000e+00> : vector<32x32xf32>
    %99 = tpu.matmul %0, %98, %cst_52 {dimension_numbers = #tpu.dot_dimension_numbers<[1], [0], [0], [1], [0, 0, 1, 1], [], []>} : vector<32x16xbf16>, vector<16x32xbf16>, vector<32x32xf32> -> vector<32x32xf32>
    %100 = arith.addf %99, %15 : vector<32x32xf32>
    %cst_53 = arith.constant 0.000000e+00 : f32
    %101 = vector.broadcast %cst_53 : f32 to vector<32x32xf32>
    %102 = arith.maximumf %100, %101 : vector<32x32xf32>
    %cst_54 = arith.constant 1.000000e-07 : f32
    %103 = vector.broadcast %cst_54 : f32 to vector<32x32xf32>
    %104 = arith.addf %102, %103 : vector<32x32xf32>
    %cst_55 = arith.constant dense<0xFF800000> : vector<32xf32>
    %105 = vector.multi_reduction <maximumf>, %104, %cst_55 [0] : vector<32x32xf32> to vector<32xf32>
    %106 = vector.shape_cast %105 : vector<32xf32> to vector<1x32xf32>
    %107 = vector.broadcast %106 : vector<1x32xf32> to vector<32x32xf32>
    %108 = arith.subf %104, %107 : vector<32x32xf32>
    %109 = math.exp %108 : vector<32x32xf32>
    %110 = arith.mulf %104, %109 : vector<32x32xf32>
    %111 = tpu.concatenate %109, %110 in 1 : vector<32x32xf32>, vector<32x32xf32> -> vector<32x64xf32>
    %112 = arith.truncf %111 : vector<32x64xf32> to vector<32x64xbf16>
    %cst_56 = arith.constant dense<0.000000e+00> : vector<16x64xf32>
    %113 = tpu.matmul %1, %112, %cst_56 {dimension_numbers = #tpu.dot_dimension_numbers<[1], [0], [0], [1], [0, 0, 1, 1], [], []>} : vector<16x32xbf16>, vector<32x64xbf16>, vector<16x64xf32> -> vector<16x64xf32>
    %114 = vector.extract_strided_slice %113 {offsets = [0, 0], sizes = [16, 32], strides = [1, 1]} : vector<16x64xf32> to vector<16x32xf32>
    %115 = vector.extract_strided_slice %113 {offsets = [0, 32], sizes = [16, 32], strides = [1, 1]} : vector<16x64xf32> to vector<16x32xf32>
    %cst_57 = arith.constant 1.000000e-07 : f32
    %116 = vector.broadcast %cst_57 : f32 to vector<16x32xf32>
    %117 = arith.maximumf %114, %116 : vector<16x32xf32>
    %118 = tpu.reciprocal %117 {approx = true} : vector<16x32xf32> -> vector<16x32xf32>
    %119 = arith.mulf %115, %118 : vector<16x32xf32>
    %120 = arith.addf %119, %97 : vector<16x32xf32>
    %121 = arith.truncf %120 : vector<16x32xf32> to vector<16x32xbf16>
    %c2_58 = arith.constant 2 : index
    %c0_59 = arith.constant 0 : index
    %c0_60 = arith.constant 0 : index
    %122 = vector.load %arg8[%c2_58, %c0_59, %c0_60] : memref<3x32x64xbf16, #tpu.memory_space<vmem>>, vector<1x32x64xbf16>
    %123 = vector.shape_cast %122 : vector<1x32x64xbf16> to vector<32x64xbf16>
    %cst_61 = arith.constant dense<0.000000e+00> : vector<16x64xf32>
    %124 = tpu.matmul %121, %123, %cst_61 {dimension_numbers = #tpu.dot_dimension_numbers<[1], [0], [0], [1], [0, 0, 1, 1], [], []>} : vector<16x32xbf16>, vector<32x64xbf16>, vector<16x64xf32> -> vector<16x64xf32>
    %c2_62 = arith.constant 2 : index
    %c0_63 = arith.constant 0 : index
    %125 = vector.load %arg13[%c2_62, %c0_63] : memref<3x64xf32, #tpu.memory_space<vmem>>, vector<1x64xf32>
    %126 = vector.broadcast %125 : vector<1x64xf32> to vector<16x64xf32>
    %127 = arith.addf %124, %126 : vector<16x64xf32>
    %cst_64 = arith.constant 0.000000e+00 : f32
    %128 = vector.broadcast %cst_64 : f32 to vector<16x64xf32>
    %129 = arith.maximumf %127, %128 : vector<16x64xf32>
    %130 = arith.truncf %129 : vector<16x64xf32> to vector<16x64xbf16>
    %c2_65 = arith.constant 2 : index
    %c0_66 = arith.constant 0 : index
    %c0_67 = arith.constant 0 : index
    %131 = vector.load %arg9[%c2_65, %c0_66, %c0_67] : memref<3x64x32xbf16, #tpu.memory_space<vmem>>, vector<1x64x32xbf16>
    %132 = vector.shape_cast %131 : vector<1x64x32xbf16> to vector<64x32xbf16>
    %cst_68 = arith.constant dense<0.000000e+00> : vector<16x32xf32>
    %133 = tpu.matmul %130, %132, %cst_68 {dimension_numbers = #tpu.dot_dimension_numbers<[1], [0], [0], [1], [0, 0, 1, 1], [], []>} : vector<16x64xbf16>, vector<64x32xbf16>, vector<16x32xf32> -> vector<16x32xf32>
    %c4 = arith.constant 4 : index
    %c0_69 = arith.constant 0 : index
    %134 = vector.load %arg12[%c4, %c0_69] : memref<5x32xf32, #tpu.memory_space<vmem>>, vector<1x32xf32>
    %135 = vector.broadcast %134 : vector<1x32xf32> to vector<16x32xf32>
    %136 = arith.addf %133, %135 : vector<16x32xf32>
    %cst_70 = arith.constant 0.000000e+00 : f32
    %137 = vector.broadcast %cst_70 : f32 to vector<16x32xf32>
    %138 = arith.maximumf %136, %137 : vector<16x32xf32>
    %c0_71 = arith.constant 0 : index
    %c0_72 = arith.constant 0 : index
    %139 = vector.load %arg5[%c0_71, %c0_72] : memref<2x16xbf16, #tpu.memory_space<vmem>>, vector<2x16xbf16>
    %140 = arith.truncf %138 : vector<16x32xf32> to vector<16x32xbf16>
    %cst_73 = arith.constant dense<0.000000e+00> : vector<2x32xf32>
    %141 = tpu.matmul %139, %140, %cst_73 {dimension_numbers = #tpu.dot_dimension_numbers<[1], [0], [0], [1], [0, 0, 1, 1], [], []>} : vector<2x16xbf16>, vector<16x32xbf16>, vector<2x32xf32> -> vector<2x32xf32>
    %c0_74 = arith.constant 0 : index
    %c0_75 = arith.constant 0 : index
    %142 = vector.load %arg6[%c0_74, %c0_75] : memref<2x1xf32, #tpu.memory_space<vmem>>, vector<2x1xf32>
    %143 = vector.broadcast %142 : vector<2x1xf32> to vector<2x32xf32>
    %144 = arith.mulf %141, %143 : vector<2x32xf32>
    %c0_76 = arith.constant 0 : index
    %c0_77 = arith.constant 0 : index
    %145 = vector.load %arg2[%c0_76, %c0_77] : memref<2x3xf32, #tpu.memory_space<vmem>>, vector<2x3xf32>
    %146 = tpu.concatenate %144, %145 in 1 : vector<2x32xf32>, vector<2x3xf32> -> vector<2x35xf32>
    %147 = arith.truncf %146 : vector<2x35xf32> to vector<2x35xbf16>
    %c0_78 = arith.constant 0 : index
    %c0_79 = arith.constant 0 : index
    %148 = vector.load %arg10[%c0_78, %c0_79] : memref<67x32xbf16, #tpu.memory_space<vmem>>, vector<35x32xbf16>
    %cst_80 = arith.constant dense<0.000000e+00> : vector<2x32xf32>
    %149 = tpu.matmul %147, %148, %cst_80 {dimension_numbers = #tpu.dot_dimension_numbers<[1], [0], [0], [1], [0, 0, 1, 1], [], []>} : vector<2x35xbf16>, vector<35x32xbf16>, vector<2x32xf32> -> vector<2x32xf32>
    %c0_81 = arith.constant 0 : index
    %c0_82 = arith.constant 0 : index
    %150 = vector.load %arg14[%c0_81, %c0_82] : memref<2x32xf32, #tpu.memory_space<vmem>>, vector<1x32xf32>
    %151 = vector.broadcast %150 : vector<1x32xf32> to vector<2x32xf32>
    %152 = arith.addf %149, %151 : vector<2x32xf32>
    %cst_83 = arith.constant 0.000000e+00 : f32
    %153 = vector.broadcast %cst_83 : f32 to vector<2x32xf32>
    %154 = arith.maximumf %152, %153 : vector<2x32xf32>
    %155 = arith.truncf %154 : vector<2x32xf32> to vector<2x32xbf16>
    %c35 = arith.constant 35 : index
    %c0_84 = arith.constant 0 : index
    %156 = vector.load %arg10[%c35, %c0_84] : memref<67x32xbf16, #tpu.memory_space<vmem>>, vector<32x32xbf16>
    %cst_85 = arith.constant dense<0.000000e+00> : vector<2x32xf32>
    %157 = tpu.matmul %155, %156, %cst_85 {dimension_numbers = #tpu.dot_dimension_numbers<[1], [0], [0], [1], [0, 0, 1, 1], [], []>} : vector<2x32xbf16>, vector<32x32xbf16>, vector<2x32xf32> -> vector<2x32xf32>
    %c1_86 = arith.constant 1 : index
    %c0_87 = arith.constant 0 : index
    %158 = vector.load %arg14[%c1_86, %c0_87] : memref<2x32xf32, #tpu.memory_space<vmem>>, vector<1x32xf32>
    %159 = vector.broadcast %158 : vector<1x32xf32> to vector<2x32xf32>
    %160 = arith.addf %157, %159 : vector<2x32xf32>
    %cst_88 = arith.constant 0.000000e+00 : f32
    %161 = vector.broadcast %cst_88 : f32 to vector<2x32xf32>
    %162 = arith.maximumf %160, %161 : vector<2x32xf32>
    %163 = arith.truncf %162 : vector<2x32xf32> to vector<2x32xbf16>
    %c0_89 = arith.constant 0 : index
    %c0_90 = arith.constant 0 : index
    %164 = vector.load %arg11[%c0_89, %c0_90] : memref<32x2xbf16, #tpu.memory_space<vmem>>, vector<32x2xbf16>
    %cst_91 = arith.constant dense<0.000000e+00> : vector<2x2xf32>
    %165 = tpu.matmul %163, %164, %cst_91 {dimension_numbers = #tpu.dot_dimension_numbers<[1], [0], [0], [1], [0, 0, 1, 1], [], []>} : vector<2x32xbf16>, vector<32x2xbf16>, vector<2x2xf32> -> vector<2x2xf32>
    %c0_92 = arith.constant 0 : index
    %c0_93 = arith.constant 0 : index
    %166 = vector.load %arg15[%c0_92, %c0_93] : memref<1x2xf32, #tpu.memory_space<vmem>>, vector<1x2xf32>
    %167 = vector.broadcast %166 : vector<1x2xf32> to vector<2x2xf32>
    %168 = arith.addf %165, %167 : vector<2x2xf32>
    %169 = arith.negf %168 : vector<2x2xf32>
    %170 = math.exp %169 : vector<2x2xf32>
    %cst_94 = arith.constant 1.000000e+00 : f32
    %171 = vector.broadcast %cst_94 : f32 to vector<2x2xf32>
    %172 = arith.addf %171, %170 : vector<2x2xf32>
    %173 = arith.divf %171, %172 : vector<2x2xf32>
    %c0_95 = arith.constant 0 : index
    %c0_96 = arith.constant 0 : index
    %174 = vector.load %arg16[%c0_95, %c0_96] : memref<2x2xf32, #tpu.memory_space<vmem>>, vector<2x2xf32>
    tpu.vector_store %arg16[%c0_95, %c0_96], %173 {strides = array<i32>} : memref<2x2xf32, #tpu.memory_space<vmem>>, vector<2x2xf32>,
    return
  }
}

</mosaic_0001>

<llo_original>
// kernel: tpu_custom_call.1
$region0: #{tpu_custom_call.1}
  #allocation0 [shape = 'u32[]', space=smem, size = 0x4, offset = 0x4, fixed_abs, tag = 'smem constant byte address 0x4 - core index']
  #allocation1 [shape = 'u32[144,128]{1,0:T(1,128)}', space=vmem, size = 0x12000, scoped, tag = 'internal scratch']
  %s0 = inlined_call_operand.vmem [shape: f32[16,8], index: 0, kind: input, shape index: {}]
  %s1 = inlined_call_operand.vmem [shape: f32[32,4], index: 1, kind: input, shape index: {}]
  %s2 = inlined_call_operand.vmem [shape: f32[2,3], index: 2, kind: input, shape index: {}]
  %s3 = inlined_call_operand.vmem [shape: bf16[32,16], index: 3, kind: input, shape index: {}]
  %s4 = inlined_call_operand.vmem [shape: bf16[16,32], index: 4, kind: input, shape index: {}]
  %s5 = inlined_call_operand.vmem [shape: bf16[2,16], index: 5, kind: input, shape index: {}]
  %s6 = inlined_call_operand.vmem [shape: f32[2,1], index: 6, kind: input, shape index: {}]
  %s7 = inlined_call_operand.vmem [shape: bf16[12,32], index: 7, kind: input, shape index: {}]
  %s8 = inlined_call_operand.vmem [shape: bf16[3,32,64], index: 8, kind: input, shape index: {}]
  %s9 = inlined_call_operand.vmem [shape: bf16[3,64,32], index: 9, kind: input, shape index: {}]
  %s10 = inlined_call_operand.vmem [shape: bf16[67,32], index: 10, kind: input, shape index: {}]
  %s11 = inlined_call_operand.vmem [shape: bf16[32,2], index: 11, kind: input, shape index: {}]
  %s12 = inlined_call_operand.vmem [shape: f32[5,32], index: 12, kind: input, shape index: {}]
  %s13 = inlined_call_operand.vmem [shape: f32[3,64], index: 13, kind: input, shape index: {}]
  %s14 = inlined_call_operand.vmem [shape: f32[2,32], index: 14, kind: input, shape index: {}]
  %s15 = inlined_call_operand.vmem [shape: f32[1,2], index: 15, kind: input, shape index: {}]
  %s16 = inlined_call_operand.hbm [shape: f32[2,2], index: 16, kind: output, shape index: {}]
  %s17 = sld [smem:[#allocation0]]
  $region74: #{tpu_custom_call.1} parent=0
    _
  %s19 = ssub.s32 1, %s17
  %s20 = scalar_select 0, %s19, %s17
  $region1: #{tpu_custom_call.1} parent=0
    #allocation2 [shape = 'u8[1024]{0}', space=vmem, size = 0x400, scoped, tag = 'output window, operand 0, single buffered']
    #allocation3 [shape = 's32[1]{0}', space=sflag, size = 0x4, scoped, tag = 'scoped memory for tpu_custom_call.1']
    %21 = vsyncpa [#allocation3], 0
    // Predicated region
    $region2: #{tpu_custom_call.1} parent=1 // pred_check
      _
    $region3: #{tpu_custom_call.1} parent=1 // pred_check_branch
      %23 = sbr.rel (0) target = $region5
    $region4: #{tpu_custom_call.1} parent=1 // pred_region
      _
    $region5: #{tpu_custom_call.1} parent=1 // pred_fallthru
      _
    // Predicated region
    $region6: #{tpu_custom_call.1} parent=1 // pred_check
      _
    $region7: #{tpu_custom_call.1} parent=1 // pred_check_branch
      %25 = sbr.rel (0) target = $region9
    $region8: #{tpu_custom_call.1} parent=1 // pred_region
      _
    $region9: #{tpu_custom_call.1} parent=1 // pred_fallthru
      _
    // Predicated region
    $region10: #{tpu_custom_call.1} parent=1 // pred_check
      _
    $region11: #{tpu_custom_call.1} parent=1 // pred_check_branch
      %27 = sbr.rel (0) target = $region13
    $region12: #{tpu_custom_call.1} parent=1 // pred_region
      _
    $region13: #{tpu_custom_call.1} parent=1 // pred_fallthru
      _
    // Predicated region
    $region14: #{tpu_custom_call.1} parent=1 // pred_check
      _
    $region15: #{tpu_custom_call.1} parent=1 // pred_check_branch
      %29 = sbr.rel (0) target = $region17
    $region16: #{tpu_custom_call.1} parent=1 // pred_region
      _
    $region17: #{tpu_custom_call.1} parent=1 // pred_fallthru
      _
    // Predicated region
    $region18: #{tpu_custom_call.1} parent=1 // pred_check
      _
    $region19: #{tpu_custom_call.1} parent=1 // pred_check_branch
      %31 = sbr.rel (0) target = $region21
    $region20: #{tpu_custom_call.1} parent=1 // pred_region
      _
    $region21: #{tpu_custom_call.1} parent=1 // pred_fallthru
      _
    // Predicated region
    $region22: #{tpu_custom_call.1} parent=1 // pred_check
      _
    $region23: #{tpu_custom_call.1} parent=1 // pred_check_branch
      %33 = sbr.rel (0) target = $region25
    $region24: #{tpu_custom_call.1} parent=1 // pred_region
      _
    $region25: #{tpu_custom_call.1} parent=1 // pred_fallthru
      _
    // Predicated region
    $region26: #{tpu_custom_call.1} parent=1 // pred_check
      _
    $region27: #{tpu_custom_call.1} parent=1 // pred_check_branch
      %35 = sbr.rel (0) target = $region29
    $region28: #{tpu_custom_call.1} parent=1 // pred_region
      _
    $region29: #{tpu_custom_call.1} parent=1 // pred_fallthru
      _
    // Predicated region
    $region30: #{tpu_custom_call.1} parent=1 // pred_check
      _
    $region31: #{tpu_custom_call.1} parent=1 // pred_check_branch
      %37 = sbr.rel (0) target = $region33
    $region32: #{tpu_custom_call.1} parent=1 // pred_region
      _
    $region33: #{tpu_custom_call.1} parent=1 // pred_fallthru
      _
    // Predicated region
    $region34: #{tpu_custom_call.1} parent=1 // pred_check
      _
    $region35: #{tpu_custom_call.1} parent=1 // pred_check_branch
      %39 = sbr.rel (0) target = $region37
    $region36: #{tpu_custom_call.1} parent=1 // pred_region
      _
    $region37: #{tpu_custom_call.1} parent=1 // pred_fallthru
      _
    // Predicated region
    $region38: #{tpu_custom_call.1} parent=1 // pred_check
      _
    $region39: #{tpu_custom_call.1} parent=1 // pred_check_branch
      %41 = sbr.rel (0) target = $region41
    $region40: #{tpu_custom_call.1} parent=1 // pred_region
      _
    $region41: #{tpu_custom_call.1} parent=1 // pred_fallthru
      _
    // Predicated region
    $region42: #{tpu_custom_call.1} parent=1 // pred_check
      _
    $region43: #{tpu_custom_call.1} parent=1 // pred_check_branch
      %43 = sbr.rel (0) target = $region45
    $region44: #{tpu_custom_call.1} parent=1 // pred_region
      _
    $region45: #{tpu_custom_call.1} parent=1 // pred_fallthru
      _
    // Predicated region
    $region46: #{tpu_custom_call.1} parent=1 // pred_check
      _
    $region47: #{tpu_custom_call.1} parent=1 // pred_check_branch
      %45 = sbr.rel (0) target = $region49
    $region48: #{tpu_custom_call.1} parent=1 // pred_region
      _
    $region49: #{tpu_custom_call.1} parent=1 // pred_fallthru
      _
    // Predicated region
    $region50: #{tpu_custom_call.1} parent=1 // pred_check
      _
    $region51: #{tpu_custom_call.1} parent=1 // pred_check_branch
      %47 = sbr.rel (0) target = $region53
    $region52: #{tpu_custom_call.1} parent=1 // pred_region
      _
    $region53: #{tpu_custom_call.1} parent=1 // pred_fallthru
      _
    // Predicated region
    $region54: #{tpu_custom_call.1} parent=1 // pred_check
      _
    $region55: #{tpu_custom_call.1} parent=1 // pred_check_branch
      %49 = sbr.rel (0) target = $region57
    $region56: #{tpu_custom_call.1} parent=1 // pred_region
      _
    $region57: #{tpu_custom_call.1} parent=1 // pred_fallthru
      _
    // Predicated region
    $region58: #{tpu_custom_call.1} parent=1 // pred_check
      _
    $region59: #{tpu_custom_call.1} parent=1 // pred_check_branch
      %51 = sbr.rel (0) target = $region61
    $region60: #{tpu_custom_call.1} parent=1 // pred_region
      _
    $region61: #{tpu_custom_call.1} parent=1 // pred_fallthru
      _
    // Predicated region
    $region62: #{tpu_custom_call.1} parent=1 // pred_check
      _
    $region63: #{tpu_custom_call.1} parent=1 // pred_check_branch
      %53 = sbr.rel (0) target = $region65
    $region64: #{tpu_custom_call.1} parent=1 // pred_region
      _
    $region65: #{tpu_custom_call.1} parent=1 // pred_fallthru
      _
    %v55 = vld [vmem:[%s3] sm:$0xf]
    %v56 = vld [vmem:[%s3 + $0x4] sm:$0xf]
    %v57 = vld [vmem:[%s3 + $0x8] sm:$0xf]
    %v58 = vld [vmem:[%s3 + $0xc] sm:$0xf]
    %v59 = vld [vmem:[%s4] sm:$0xf]
    %v60 = vld [vmem:[%s4 + $0x4] sm:$0xf]
    %v61 = vld [vmem:[%s7] sm:$0xf]
    %v62 = vld [vmem:[%s7 + $0x4] sm:$0x3]
    %v63 = vld [vmem:[%s0] sm:$0xff]
    %v64 = vld [vmem:[%s0 + $0x8] sm:$0xff]
    %v65 = vpack.c.bf16 %v64, %v63
    %v66 = vld [vmem:[%s12] sm:$0x1]
    %v67 = vlaneseq
    %v68 = vshrl.u32 %v67, 7
    %v69 = vsub.s32 0, %v68
    %v70 = vrot.slane %v66, %v69
    %vm71 = vcmask 64512
    %v73 = vsel %vm71, %v65, 0
    %vm75 = vcmask 1043456
    %v77 = vsel %vm75, %v61, 0
    %79 = vmatprep.subr.bf16.mxu0 0
    %80 = vmatpush1.bf16.msra.mxu0 %v77
    %81 = vmatprep.subr.bf16.mxu0 0
    %82 = vmatpush1.bf16.msra.mxu0 0
    %83 = vmatprep.subr.bf16.mxu0 0
    %84 = vmatpush1.bf16.msra.mxu0 0
    %85 = vmatprep.subr.bf16.mxu0 0
    %86 = vmatpush1.bf16.msra.mxu0 0
    %87 = vmatprep.subr.bf16.mxu0 0
    %88 = vmatpush1.bf16.msra.mxu0 0
    %89 = vmatprep.subr.bf16.mxu0 0
    %90 = vmatpush1.bf16.msra.mxu0 0
    %91 = vmatprep.subr.bf16.mxu0 0
    %92 = vmatpush1.bf16.msra.mxu0 0
    %93 = vmatprep.subr.bf16.mxu0 0
    %94 = vmatpush1.bf16.msra.mxu0 0
    %95 = vmatprep.subr.bf16.mxu0 0
    %96 = vmatpush1.bf16.msra.mxu0 0
    %97 = vmatprep.subr.bf16.mxu0 0
    %98 = vmatpush1.bf16.msra.mxu0 0
    %99 = vmatprep.subr.bf16.mxu0 0
    %100 = vmatpush1.bf16.msra.mxu0 0
    %101 = vmatprep.subr.bf16.mxu0 0
    %102 = vmatpush1.bf16.msra.mxu0 0
    %103 = vmatprep.subr.bf16.mxu0 0
    %104 = vmatpush1.bf16.msra.mxu0 0
    %105 = vmatprep.subr.bf16.mxu0 0
    %106 = vmatpush1.bf16.msra.mxu0 0
    %107 = vmatprep.subr.bf16.mxu0 0
    %108 = vmatpush1.bf16.msra.mxu0 0
    %109 = vmatprep.subr.bf16.mxu0 0
    %110 = vmatpush1.bf16.msra.mxu0 0
    %111 = vmatprep.mubr.bf16.mxu0 0
    %112 = vmatmul.mubr.bf16.gmra.mrb[0].mxu0 %v73
    %v113 = vpop.f32.mrb[0].mxu0
    %v114 = vadd.f32 %v70, %v113
    %v115 = vpop.f32.mrb[0].mxu0
    %v116 = vpop.f32.mrb[0].mxu0
    %v117 = vadd.f32 %v70, %v116
    %v118 = vpop.f32.mrb[0].mxu0
    %119 = vdwg.mxu0
    %v120 = vld [vmem:[%s1] sm:$0xff]
    %v121 = vld [vmem:[%s1 + $0x8] sm:$0xff]
    %v122 = vld [vmem:[%s1 + $0x10] sm:$0xff]
    %v123 = vld [vmem:[%s1 + $0x18] sm:$0xff]
    %v124 = vpack.c.bf16 %v121, %v120
    %v125 = vpack.c.bf16 %v123, %v122
    %v126 = vld [vmem:[%s12 + $0x1] sm:$0x1]
    %v127 = vlaneseq
    %v128 = vshrl.u32 %v127, 7
    %v129 = vsub.s32 0, %v128
    %v130 = vrot.slane %v126, %v129
    %vm131 = vcmask 31744
    %v133 = vsel %vm131, %v124, 0
    %v136 = vsel %vm131, %v125, 0
    %vm138 = vcmask 1041408
    %v140 = vsel %vm138, %v62, 0
    %142 = vmatprep.subr.bf16.mxu0 0
    %143 = vmatpush1.bf16.msra.mxu0 %v140
    %144 = vmatprep.subr.bf16.mxu0 0
    %145 = vmatpush1.bf16.msra.mxu0 0
    %146 = vmatprep.subr.bf16.mxu0 0
    %147 = vmatpush1.bf16.msra.mxu0 0
    %148 = vmatprep.subr.bf16.mxu0 0
    %149 = vmatpush1.bf16.msra.mxu0 0
    %150 = vmatprep.subr.bf16.mxu0 0
    %151 = vmatpush1.bf16.msra.mxu0 0
    %152 = vmatprep.subr.bf16.mxu0 0
    %153 = vmatpush1.bf16.msra.mxu0 0
    %154 = vmatprep.subr.bf16.mxu0 0
    %155 = vmatpush1.bf16.msra.mxu0 0
    %156 = vmatprep.subr.bf16.mxu0 0
    %157 = vmatpush1.bf16.msra.mxu0 0
    %158 = vmatprep.subr.bf16.mxu0 0
    %159 = vmatpush1.bf16.msra.mxu0 0
    %160 = vmatprep.subr.bf16.mxu0 0
    %161 = vmatpush1.bf16.msra.mxu0 0
    %162 = vmatprep.subr.bf16.mxu0 0
    %163 = vmatpush1.bf16.msra.mxu0 0
    %164 = vmatprep.subr.bf16.mxu0 0
    %165 = vmatpush1.bf16.msra.mxu0 0
    %166 = vmatprep.subr.bf16.mxu0 0
    %167 = vmatpush1.bf16.msra.mxu0 0
    %168 = vmatprep.subr.bf16.mxu0 0
    %169 = vmatpush1.bf16.msra.mxu0 0
    %170 = vmatprep.subr.bf16.mxu0 0
    %171 = vmatpush1.bf16.msra.mxu0 0
    %172 = vmatprep.subr.bf16.mxu0 0
    %173 = vmatpush1.bf16.msra.mxu0 0
    %174 = vmatprep.mubr.bf16.mxu0 0
    %175 = vmatmul.mubr.bf16.gmra.mrb[0].mxu0 %v133
    %v176 = vpop.f32.mrb[0].mxu0
    %v177 = vadd.f32 %v130, %v176
    %v178 = vpop.f32.mrb[0].mxu0
    %v179 = vpop.f32.mrb[0].mxu0
    %v180 = vadd.f32 %v130, %v179
    %v181 = vpop.f32.mrb[0].mxu0
    %182 = vmatprep.mubr.bf16.mxu0 0
    %183 = vmatmul.mubr.bf16.gmra.mrb[0].mxu0 %v136
    %v184 = vpop.f32.mrb[0].mxu0
    %v185 = vadd.f32 %v130, %v184
    %v186 = vpop.f32.mrb[0].mxu0
    %v187 = vpop.f32.mrb[0].mxu0
    %v188 = vadd.f32 %v130, %v187
    %v189 = vpop.f32.mrb[0].mxu0
    %190 = vdwg.mxu0
    %v191 = vpack.c.bf16 %v117, %v114
    %v196 = vunpack.c.l.b16 %v55
    %v197 = vunpack.c.l.b16 %v56
    %v198 = vunpack.c.l.b16 %v57
    %v199 = vunpack.c.l.b16 %v58
    %v200 = vpack.c.b16 %v197, %v196
    %v201 = vpack.c.b16 %v199, %v198
    %vm202 = vcmask 130048
    %v204 = vsel %vm202, %v200, 0
    %v207 = vsel %vm202, %v201, 0
    %209 = vmatprep.subr.bf16.mxu0 0
    %210 = vmatpush1.bf16.msra.mxu0 %v191
    %211 = vmatprep.subr.bf16.mxu0 0
    %212 = vmatpush1.bf16.msra.mxu0 0
    %213 = vmatprep.subr.bf16.mxu0 0
    %214 = vmatpush1.bf16.msra.mxu0 0
    %215 = vmatprep.subr.bf16.mxu0 0
    %216 = vmatpush1.bf16.msra.mxu0 0
    %217 = vmatprep.subr.bf16.mxu0 0
    %218 = vmatpush1.bf16.msra.mxu0 0
    %219 = vmatprep.subr.bf16.mxu0 0
    %220 = vmatpush1.bf16.msra.mxu0 0
    %221 = vmatprep.subr.bf16.mxu0 0
    %222 = vmatpush1.bf16.msra.mxu0 0
    %223 = vmatprep.subr.bf16.mxu0 0
    %224 = vmatpush1.bf16.msra.mxu0 0
    %225 = vmatprep.subr.bf16.mxu0 0
    %226 = vmatpush1.bf16.msra.mxu0 0
    %227 = vmatprep.subr.bf16.mxu0 0
    %228 = vmatpush1.bf16.msra.mxu0 0
    %229 = vmatprep.subr.bf16.mxu0 0
    %230 = vmatpush1.bf16.msra.mxu0 0
    %231 = vmatprep.subr.bf16.mxu0 0
    %232 = vmatpush1.bf16.msra.mxu0 0
    %233 = vmatprep.subr.bf16.mxu0 0
    %234 = vmatpush1.bf16.msra.mxu0 0
    %235 = vmatprep.subr.bf16.mxu0 0
    %236 = vmatpush1.bf16.msra.mxu0 0
    %237 = vmatprep.subr.bf16.mxu0 0
    %238 = vmatpush1.bf16.msra.mxu0 0
    %239 = vmatprep.subr.bf16.mxu0 0
    %240 = vmatpush1.bf16.msra.mxu0 0
    %241 = vmatprep.mubr.bf16.mxu0 0
    %242 = vmatmul.mubr.bf16.gmra.mrb[0].mxu0 %v204
    %v243 = vpop.f32.mrb[0].mxu0
    %v244 = vadd.f32 %v177, %v243
    %v245 = vpop.f32.mrb[0].mxu0
    %v246 = vpop.f32.mrb[0].mxu0
    %v247 = vadd.f32 %v180, %v246
    %v248 = vpop.f32.mrb[0].mxu0
    %249 = vmatprep.mubr.bf16.mxu0 0
    %250 = vmatmul.mubr.bf16.gmra.mrb[0].mxu0 %v207
    %v251 = vpop.f32.mrb[0].mxu0
    %v252 = vadd.f32 %v185, %v251
    %v253 = vpop.f32.mrb[0].mxu0
    %v254 = vpop.f32.mrb[0].mxu0
    %v255 = vadd.f32 %v188, %v254
    %v256 = vpop.f32.mrb[0].mxu0
    %257 = vdwg.mxu0
    %v258 = vmax.f32 %v244, 0.0
    %v259 = vmax.f32 %v247, 0.0
    %v260 = vmax.f32 %v252, 0.0
    %v261 = vmax.f32 %v255, 0.0
    %v262 = vadd.f32 %v258, 1e-07
    %v263 = vadd.f32 %v259, 1e-07
    %v264 = vadd.f32 %v260, 1e-07
    %v265 = vadd.f32 %v261, 1e-07
    %vm266 = vcmask 261120
    %v267 = vsel %vm266, %v262, -inf
    %v268 = vsel %vm266, %v263, -inf
    %v269 = vsel %vm266, %v264, -inf
    %v270 = vsel %vm266, %v265, -inf
    %v271 = vmax.f32 %v267, %v268
    %v272 = vmax.f32 %v269, %v270
    %v273 = vmax.f32 %v271, %v272
    %v274 = vrot.slane %v273, 4
    %v275 = vmax.f32 %v273, %v274
    %v276 = vrot.slane %v275, 2
    %v277 = vmax.f32 %v275, %v276
    %v278 = vrot.slane %v277, 1
    %v279 = vmax.f32 %v277, %v278
    %v280 = vsub.f32 %v262, %v279
    %v281 = vsub.f32 %v263, %v279
    %v282 = vsub.f32 %v264, %v279
    %v283 = vsub.f32 %v265, %v279
    %v284 = vmul.f32 %v280, 1.442695
    %v285 = vpow.pop %v284
    %v286 = vmul.f32 %v281, 1.442695
    %v287 = vpow.pop %v286
    %v288 = vmul.f32 %v282, 1.442695
    %v289 = vpow.pop %v288
    %v290 = vmul.f32 %v283, 1.442695
    %v291 = vpow.pop %v290
    %v292 = vmul.f32 %v262, %v285
    %v293 = vmul.f32 %v263, %v287
    %v294 = vmul.f32 %v264, %v289
    %v295 = vmul.f32 %v265, %v291
    %300 = vrot.lane.b32.xlu0 %v292, 32
    %v301 = vpop.permute.xlu0 %300
    %302 = vrot.lane.b32.xlu0 %v293, 32
    %v303 = vpop.permute.xlu0 %302
    %304 = vrot.lane.b32.xlu0 %v294, 32
    %v305 = vpop.permute.xlu0 %304
    %306 = vrot.lane.b32.xlu0 %v295, 32
    %v307 = vpop.permute.xlu0 %306
    %v312 = vsel %vm266, %v285, %v301
    %v313 = vsel %vm266, %v287, %v303
    %v314 = vsel %vm266, %v289, %v305
    %v315 = vsel %vm266, %v291, %v307
    %v316 = vpack.c.bf16 %v313, %v312
    %v317 = vpack.c.bf16 %v315, %v314
    %v320 = vunpack.c.l.b16 %v59
    %v321 = vunpack.c.l.b16 %v60
    %v322 = vpack.c.b16 %v321, %v320
    %v324 = vsel %vm266, %v322, 0
    %326 = vmatprep.subr.bf16.mxu0 0
    %327 = vmatpush1.bf16.msra.mxu0 %v316
    %328 = vmatprep.subr.bf16.mxu0 0
    %329 = vmatpush1.bf16.msra.mxu0 %v317
    %330 = vmatprep.subr.bf16.mxu0 0
    %331 = vmatpush1.bf16.msra.mxu0 0
    %332 = vmatprep.subr.bf16.mxu0 0
    %333 = vmatpush1.bf16.msra.mxu0 0
    %334 = vmatprep.subr.bf16.mxu0 0
    %335 = vmatpush1.bf16.msra.mxu0 0
    %336 = vmatprep.subr.bf16.mxu0 0
    %337 = vmatpush1.bf16.msra.mxu0 0
    %338 = vmatprep.subr.bf16.mxu0 0
    %339 = vmatpush1.bf16.msra.mxu0 0
    %340 = vmatprep.subr.bf16.mxu0 0
    %341 = vmatpush1.bf16.msra.mxu0 0
    %342 = vmatprep.subr.bf16.mxu0 0
    %343 = vmatpush1.bf16.msra.mxu0 0
    %344 = vmatprep.subr.bf16.mxu0 0
    %345 = vmatpush1.bf16.msra.mxu0 0
    %346 = vmatprep.subr.bf16.mxu0 0
    %347 = vmatpush1.bf16.msra.mxu0 0
    %348 = vmatprep.subr.bf16.mxu0 0
    %349 = vmatpush1.bf16.msra.mxu0 0
    %350 = vmatprep.subr.bf16.mxu0 0
    %351 = vmatpush1.bf16.msra.mxu0 0
    %352 = vmatprep.subr.bf16.mxu0 0
    %353 = vmatpush1.bf16.msra.mxu0 0
    %354 = vmatprep.subr.bf16.mxu0 0
    %355 = vmatpush1.bf16.msra.mxu0 0
    %356 = vmatprep.subr.bf16.mxu0 0
    %357 = vmatpush1.bf16.msra.mxu0 0
    %358 = vmatprep.mubr.bf16.mxu0 0
    %359 = vmatmul.mubr.bf16.gmra.mrb[0].mxu0 %v324
    %v360 = vpop.f32.mrb[0].mxu0
    %v361 = vadd.f32 0.0, %v360
    %v362 = vpop.f32.mrb[0].mxu0
    %v363 = vpop.f32.mrb[0].mxu0
    %v364 = vadd.f32 0.0, %v363
    %v365 = vpop.f32.mrb[0].mxu0
    %366 = vdwg.mxu0
    %v367 = vmax.f32 %v361, 1e-07
    %v368 = vmax.f32 %v364, 1e-07
    %v369 = vrcp.pop %v367
    %v370 = vrcp.pop %v368
    %373 = vrot.lane.b32.xlu0 %v369, 32
    %v374 = vpop.permute.xlu0 %373
    %375 = vrot.lane.b32.xlu0 %v370, 32
    %v376 = vpop.permute.xlu0 %375
    %v379 = vmul.f32 %v361, %v374
    %v380 = vmul.f32 %v364, %v376
    %383 = vrot.lane.b32.xlu0 %v114, 32
    %v384 = vpop.permute.xlu0 %383
    %385 = vrot.lane.b32.xlu0 %v117, 32
    %v386 = vpop.permute.xlu0 %385
    %v389 = vadd.f32 %v379, %v384
    %v390 = vadd.f32 %v380, %v386
    %v391 = vpack.c.bf16 %v390, %v389
    %v392 = vld [vmem:[%s8] sm:$0xf]
    %v393 = vld [vmem:[%s8 + $0x4] sm:$0xf]
    %v394 = vld [vmem:[%s8 + $0x8] sm:$0xf]
    %v395 = vld [vmem:[%s8 + $0xc] sm:$0xf]
    %v396 = vld [vmem:[%s13] sm:$0x1]
    %v397 = vlaneseq
    %v398 = vshrl.u32 %v397, 7
    %v399 = vsub.s32 0, %v398
    %v400 = vrot.slane %v396, %v399
    %402 = vrot.lane.b32.xlu0 %v391, 96
    %v403 = vpop.permute.xlu0 %402
    %v408 = vunpack.c.l.b16 %v392
    %v409 = vunpack.c.l.b16 %v393
    %v410 = vunpack.c.l.b16 %v394
    %v411 = vunpack.c.l.b16 %v395
    %v412 = vpack.c.b16 %v409, %v408
    %v413 = vpack.c.b16 %v411, %v410
    %v417 = vsel %vm266, %v403, 0
    %419 = vmatprep.subr.bf16.mxu0 0
    %420 = vmatpush1.bf16.msra.mxu0 %v412
    %421 = vmatprep.subr.bf16.mxu0 0
    %422 = vmatpush1.bf16.msra.mxu0 %v413
    %423 = vmatprep.subr.bf16.mxu0 0
    %424 = vmatpush1.bf16.msra.mxu0 0
    %425 = vmatprep.subr.bf16.mxu0 0
    %426 = vmatpush1.bf16.msra.mxu0 0
    %427 = vmatprep.subr.bf16.mxu0 0
    %428 = vmatpush1.bf16.msra.mxu0 0
    %429 = vmatprep.subr.bf16.mxu0 0
    %430 = vmatpush1.bf16.msra.mxu0 0
    %431 = vmatprep.subr.bf16.mxu0 0
    %432 = vmatpush1.bf16.msra.mxu0 0
    %433 = vmatprep.subr.bf16.mxu0 0
    %434 = vmatpush1.bf16.msra.mxu0 0
    %435 = vmatprep.subr.bf16.mxu0 0
    %436 = vmatpush1.bf16.msra.mxu0 0
    %437 = vmatprep.subr.bf16.mxu0 0
    %438 = vmatpush1.bf16.msra.mxu0 0
    %439 = vmatprep.subr.bf16.mxu0 0
    %440 = vmatpush1.bf16.msra.mxu0 0
    %441 = vmatprep.subr.bf16.mxu0 0
    %442 = vmatpush1.bf16.msra.mxu0 0
    %443 = vmatprep.subr.bf16.mxu0 0
    %444 = vmatpush1.bf16.msra.mxu0 0
    %445 = vmatprep.subr.bf16.mxu0 0
    %446 = vmatpush1.bf16.msra.mxu0 0
    %447 = vmatprep.subr.bf16.mxu0 0
    %448 = vmatpush1.bf16.msra.mxu0 0
    %449 = vmatprep.subr.bf16.mxu0 0
    %450 = vmatpush1.bf16.msra.mxu0 0
    %451 = vmatprep.mubr.bf16.mxu0 0
    %452 = vmatmul.mubr.bf16.gmra.mrb[0].mxu0 %v417
    %v453 = vpop.f32.mrb[0].mxu0
    %v454 = vadd.f32 %v400, %v453
    %v455 = vpop.f32.mrb[0].mxu0
    %v456 = vpop.f32.mrb[0].mxu0
    %v457 = vadd.f32 %v400, %v456
    %v458 = vpop.f32.mrb[0].mxu0
    %459 = vdwg.mxu0
    %v460 = vmax.f32 %v454, 0.0
    %v461 = vmax.f32 %v457, 0.0
    %v462 = vpack.c.bf16 %v461, %v460
    %v463 = vld [vmem:[%s9] sm:$0xf]
    %v464 = vld [vmem:[%s9 + $0x4] sm:$0xf]
    %v465 = vld [vmem:[%s9 + $0x8] sm:$0xf]
    %v466 = vld [vmem:[%s9 + $0xc] sm:$0xf]
    %v467 = vld [vmem:[%s9 + $0x10] sm:$0xf]
    %v468 = vld [vmem:[%s9 + $0x14] sm:$0xf]
    %v469 = vld [vmem:[%s9 + $0x18] sm:$0xf]
    %v470 = vld [vmem:[%s9 + $0x1c] sm:$0xf]
    %v471 = vld [vmem:[%s12 + $0x2] sm:$0x1]
    %v472 = vlaneseq
    %v473 = vshrl.u32 %v472, 7
    %v474 = vsub.s32 0, %v473
    %v475 = vrot.slane %v471, %v474
    %v484 = vunpack.c.l.b16 %v463
    %v485 = vunpack.c.l.b16 %v464
    %v486 = vunpack.c.l.b16 %v465
    %v487 = vunpack.c.l.b16 %v466
    %v488 = vunpack.c.l.b16 %v467
    %v489 = vunpack.c.l.b16 %v468
    %v490 = vunpack.c.l.b16 %v469
    %v491 = vunpack.c.l.b16 %v470
    %v492 = vpack.c.b16 %v485, %v484
    %v493 = vpack.c.b16 %v487, %v486
    %v494 = vpack.c.b16 %v489, %v488
    %v495 = vpack.c.b16 %v491, %v490
    %vm500 = vcmask 523264
    %v502 = vsel %vm500, %v462, 0
    %504 = vmatprep.subr.bf16.mxu0 0
    %505 = vmatpush1.bf16.msra.mxu0 %v492
    %506 = vmatprep.subr.bf16.mxu0 0
    %507 = vmatpush1.bf16.msra.mxu0 %v493
    %508 = vmatprep.subr.bf16.mxu0 0
    %509 = vmatpush1.bf16.msra.mxu0 %v494
    %510 = vmatprep.subr.bf16.mxu0 0
    %511 = vmatpush1.bf16.msra.mxu0 %v495
    %512 = vmatprep.subr.bf16.mxu0 0
    %513 = vmatpush1.bf16.msra.mxu0 0
    %514 = vmatprep.subr.bf16.mxu0 0
    %515 = vmatpush1.bf16.msra.mxu0 0
    %516 = vmatprep.subr.bf16.mxu0 0
    %517 = vmatpush1.bf16.msra.mxu0 0
    %518 = vmatprep.subr.bf16.mxu0 0
    %519 = vmatpush1.bf16.msra.mxu0 0
    %520 = vmatprep.subr.bf16.mxu0 0
    %521 = vmatpush1.bf16.msra.mxu0 0
    %522 = vmatprep.subr.bf16.mxu0 0
    %523 = vmatpush1.bf16.msra.mxu0 0
    %524 = vmatprep.subr.bf16.mxu0 0
    %525 = vmatpush1.bf16.msra.mxu0 0
    %526 = vmatprep.subr.bf16.mxu0 0
    %527 = vmatpush1.bf16.msra.mxu0 0
    %528 = vmatprep.subr.bf16.mxu0 0
    %529 = vmatpush1.bf16.msra.mxu0 0
    %530 = vmatprep.subr.bf16.mxu0 0
    %531 = vmatpush1.bf16.msra.mxu0 0
    %532 = vmatprep.subr.bf16.mxu0 0
    %533 = vmatpush1.bf16.msra.mxu0 0
    %534 = vmatprep.subr.bf16.mxu0 0
    %535 = vmatpush1.bf16.msra.mxu0 0
    %536 = vmatprep.mubr.bf16.mxu0 0
    %537 = vmatmul.mubr.bf16.gmra.mrb[0].mxu0 %v502
    %v538 = vpop.f32.mrb[0].mxu0
    %v539 = vadd.f32 %v475, %v538
    %v540 = vpop.f32.mrb[0].mxu0
    %v541 = vpop.f32.mrb[0].mxu0
    %v542 = vadd.f32 %v475, %v541
    %v543 = vpop.f32.mrb[0].mxu0
    %544 = vdwg.mxu0
    %v545 = vmax.f32 %v539, 0.0
    %v546 = vmax.f32 %v542, 0.0
    %v547 = vpack.c.bf16 %v546, %v545
    %548 = vmatprep.subr.bf16.mxu0 0
    %549 = vmatpush1.bf16.msra.mxu0 %v547
    %550 = vmatprep.subr.bf16.mxu0 0
    %551 = vmatpush1.bf16.msra.mxu0 0
    %552 = vmatprep.subr.bf16.mxu0 0
    %553 = vmatpush1.bf16.msra.mxu0 0
    %554 = vmatprep.subr.bf16.mxu0 0
    %555 = vmatpush1.bf16.msra.mxu0 0
    %556 = vmatprep.subr.bf16.mxu0 0
    %557 = vmatpush1.bf16.msra.mxu0 0
    %558 = vmatprep.subr.bf16.mxu0 0
    %559 = vmatpush1.bf16.msra.mxu0 0
    %560 = vmatprep.subr.bf16.mxu0 0
    %561 = vmatpush1.bf16.msra.mxu0 0
    %562 = vmatprep.subr.bf16.mxu0 0
    %563 = vmatpush1.bf16.msra.mxu0 0
    %564 = vmatprep.subr.bf16.mxu0 0
    %565 = vmatpush1.bf16.msra.mxu0 0
    %566 = vmatprep.subr.bf16.mxu0 0
    %567 = vmatpush1.bf16.msra.mxu0 0
    %568 = vmatprep.subr.bf16.mxu0 0
    %569 = vmatpush1.bf16.msra.mxu0 0
    %570 = vmatprep.subr.bf16.mxu0 0
    %571 = vmatpush1.bf16.msra.mxu0 0
    %572 = vmatprep.subr.bf16.mxu0 0
    %573 = vmatpush1.bf16.msra.mxu0 0
    %574 = vmatprep.subr.bf16.mxu0 0
    %575 = vmatpush1.bf16.msra.mxu0 0
    %576 = vmatprep.subr.bf16.mxu0 0
    %577 = vmatpush1.bf16.msra.mxu0 0
    %578 = vmatprep.subr.bf16.mxu0 0
    %579 = vmatpush1.bf16.msra.mxu0 0
    %580 = vmatprep.mubr.bf16.mxu0 0
    %581 = vmatmul.mubr.bf16.gmra.mrb[0].mxu0 %v204
    %v582 = vpop.f32.mrb[0].mxu0
    %v583 = vadd.f32 %v177, %v582
    %v584 = vpop.f32.mrb[0].mxu0
    %v585 = vpop.f32.mrb[0].mxu0
    %v586 = vadd.f32 %v180, %v585
    %v587 = vpop.f32.mrb[0].mxu0
    %588 = vmatprep.mubr.bf16.mxu0 0
    %589 = vmatmul.mubr.bf16.gmra.mrb[0].mxu0 %v207
    %v590 = vpop.f32.mrb[0].mxu0
    %v591 = vadd.f32 %v185, %v590
    %v592 = vpop.f32.mrb[0].mxu0
    %v593 = vpop.f32.mrb[0].mxu0
    %v594 = vadd.f32 %v188, %v593
    %v595 = vpop.f32.mrb[0].mxu0
    %596 = vdwg.mxu0
    %v597 = vmax.f32 %v583, 0.0
    %v598 = vmax.f32 %v586, 0.0
    %v599 = vmax.f32 %v591, 0.0
    %v600 = vmax.f32 %v594, 0.0
    %v601 = vadd.f32 %v597, 1e-07
    %v602 = vadd.f32 %v598, 1e-07
    %v603 = vadd.f32 %v599, 1e-07
    %v604 = vadd.f32 %v600, 1e-07
    %v605 = vsel %vm266, %v601, -inf
    %v606 = vsel %vm266, %v602, -inf
    %v607 = vsel %vm266, %v603, -inf
    %v608 = vsel %vm266, %v604, -inf
    %v609 = vmax.f32 %v605, %v606
    %v610 = vmax.f32 %v607, %v608
    %v611 = vmax.f32 %v609, %v610
    %v612 = vrot.slane %v611, 4
    %v613 = vmax.f32 %v611, %v612
    %v614 = vrot.slane %v613, 2
    %v615 = vmax.f32 %v613, %v614
    %v616 = vrot.slane %v615, 1
    %v617 = vmax.f32 %v615, %v616
    %v618 = vsub.f32 %v601, %v617
    %v619 = vsub.f32 %v602, %v617
    %v620 = vsub.f32 %v603, %v617
    %v621 = vsub.f32 %v604, %v617
    %v622 = vmul.f32 %v618, 1.442695
    %v623 = vpow.pop %v622
    %v624 = vmul.f32 %v619, 1.442695
    %v625 = vpow.pop %v624
    %v626 = vmul.f32 %v620, 1.442695
    %v627 = vpow.pop %v626
    %v628 = vmul.f32 %v621, 1.442695
    %v629 = vpow.pop %v628
    %v630 = vmul.f32 %v601, %v623
    %v631 = vmul.f32 %v602, %v625
    %v632 = vmul.f32 %v603, %v627
    %v633 = vmul.f32 %v604, %v629
    %638 = vrot.lane.b32.xlu0 %v630, 32
    %v639 = vpop.permute.xlu0 %638
    %640 = vrot.lane.b32.xlu0 %v631, 32
    %v641 = vpop.permute.xlu0 %640
    %642 = vrot.lane.b32.xlu0 %v632, 32
    %v643 = vpop.permute.xlu0 %642
    %644 = vrot.lane.b32.xlu0 %v633, 32
    %v645 = vpop.permute.xlu0 %644
    %v650 = vsel %vm266, %v623, %v639
    %v651 = vsel %vm266, %v625, %v641
    %v652 = vsel %vm266, %v627, %v643
    %v653 = vsel %vm266, %v629, %v645
    %v654 = vpack.c.bf16 %v651, %v650
    %v655 = vpack.c.bf16 %v653, %v652
    %656 = vmatprep.subr.bf16.mxu0 0
    %657 = vmatpush1.bf16.msra.mxu0 %v654
    %658 = vmatprep.subr.bf16.mxu0 0
    %659 = vmatpush1.bf16.msra.mxu0 %v655
    %660 = vmatprep.subr.bf16.mxu0 0
    %661 = vmatpush1.bf16.msra.mxu0 0
    %662 = vmatprep.subr.bf16.mxu0 0
    %663 = vmatpush1.bf16.msra.mxu0 0
    %664 = vmatprep.subr.bf16.mxu0 0
    %665 = vmatpush1.bf16.msra.mxu0 0
    %666 = vmatprep.subr.bf16.mxu0 0
    %667 = vmatpush1.bf16.msra.mxu0 0
    %668 = vmatprep.subr.bf16.mxu0 0
    %669 = vmatpush1.bf16.msra.mxu0 0
    %670 = vmatprep.subr.bf16.mxu0 0
    %671 = vmatpush1.bf16.msra.mxu0 0
    %672 = vmatprep.subr.bf16.mxu0 0
    %673 = vmatpush1.bf16.msra.mxu0 0
    %674 = vmatprep.subr.bf16.mxu0 0
    %675 = vmatpush1.bf16.msra.mxu0 0
    %676 = vmatprep.subr.bf16.mxu0 0
    %677 = vmatpush1.bf16.msra.mxu0 0
    %678 = vmatprep.subr.bf16.mxu0 0
    %679 = vmatpush1.bf16.msra.mxu0 0
    %680 = vmatprep.subr.bf16.mxu0 0
    %681 = vmatpush1.bf16.msra.mxu0 0
    %682 = vmatprep.subr.bf16.mxu0 0
    %683 = vmatpush1.bf16.msra.mxu0 0
    %684 = vmatprep.subr.bf16.mxu0 0
    %685 = vmatpush1.bf16.msra.mxu0 0
    %686 = vmatprep.subr.bf16.mxu0 0
    %687 = vmatpush1.bf16.msra.mxu0 0
    %688 = vmatprep.mubr.bf16.mxu0 0
    %689 = vmatmul.mubr.bf16.gmra.mrb[0].mxu0 %v324
    %v690 = vpop.f32.mrb[0].mxu0
    %v691 = vadd.f32 0.0, %v690
    %v692 = vpop.f32.mrb[0].mxu0
    %v693 = vpop.f32.mrb[0].mxu0
    %v694 = vadd.f32 0.0, %v693
    %v695 = vpop.f32.mrb[0].mxu0
    %696 = vdwg.mxu0
    %v697 = vmax.f32 %v691, 1e-07
    %v698 = vmax.f32 %v694, 1e-07
    %v699 = vrcp.pop %v697
    %v700 = vrcp.pop %v698
    %703 = vrot.lane.b32.xlu0 %v699, 32
    %v704 = vpop.permute.xlu0 %703
    %705 = vrot.lane.b32.xlu0 %v700, 32
    %v706 = vpop.permute.xlu0 %705
    %v709 = vmul.f32 %v691, %v704
    %v710 = vmul.f32 %v694, %v706
    %713 = vrot.lane.b32.xlu0 %v545, 32
    %v714 = vpop.permute.xlu0 %713
    %715 = vrot.lane.b32.xlu0 %v546, 32
    %v716 = vpop.permute.xlu0 %715
    %v719 = vadd.f32 %v709, %v714
    %v720 = vadd.f32 %v710, %v716
    %v721 = vpack.c.bf16 %v720, %v719
    %s722 = scalar_lea.vmem %s8, 16
    %v723 = vld [vmem:[%s722] sm:$0xf]
    %v724 = vld [vmem:[%s722 + $0x4] sm:$0xf]
    %v725 = vld [vmem:[%s722 + $0x8] sm:$0xf]
    %v726 = vld [vmem:[%s722 + $0xc] sm:$0xf]
    %v727 = vld [vmem:[%s13 + $0x1] sm:$0x1]
    %v728 = vlaneseq
    %v729 = vshrl.u32 %v728, 7
    %v730 = vsub.s32 0, %v729
    %v731 = vrot.slane %v727, %v730
    %733 = vrot.lane.b32.xlu0 %v721, 96
    %v734 = vpop.permute.xlu0 %733
    %v739 = vunpack.c.l.b16 %v723
    %v740 = vunpack.c.l.b16 %v724
    %v741 = vunpack.c.l.b16 %v725
    %v742 = vunpack.c.l.b16 %v726
    %v743 = vpack.c.b16 %v740, %v739
    %v744 = vpack.c.b16 %v742, %v741
    %v748 = vsel %vm266, %v734, 0
    %750 = vmatprep.subr.bf16.mxu0 0
    %751 = vmatpush1.bf16.msra.mxu0 %v743
    %752 = vmatprep.subr.bf16.mxu0 0
    %753 = vmatpush1.bf16.msra.mxu0 %v744
    %754 = vmatprep.subr.bf16.mxu0 0
    %755 = vmatpush1.bf16.msra.mxu0 0
    %756 = vmatprep.subr.bf16.mxu0 0
    %757 = vmatpush1.bf16.msra.mxu0 0
    %758 = vmatprep.subr.bf16.mxu0 0
    %759 = vmatpush1.bf16.msra.mxu0 0
    %760 = vmatprep.subr.bf16.mxu0 0
    %761 = vmatpush1.bf16.msra.mxu0 0
    %762 = vmatprep.subr.bf16.mxu0 0
    %763 = vmatpush1.bf16.msra.mxu0 0
    %764 = vmatprep.subr.bf16.mxu0 0
    %765 = vmatpush1.bf16.msra.mxu0 0
    %766 = vmatprep.subr.bf16.mxu0 0
    %767 = vmatpush1.bf16.msra.mxu0 0
    %768 = vmatprep.subr.bf16.mxu0 0
    %769 = vmatpush1.bf16.msra.mxu0 0
    %770 = vmatprep.subr.bf16.mxu0 0
    %771 = vmatpush1.bf16.msra.mxu0 0
    %772 = vmatprep.subr.bf16.mxu0 0
    %773 = vmatpush1.bf16.msra.mxu0 0
    %774 = vmatprep.subr.bf16.mxu0 0
    %775 = vmatpush1.bf16.msra.mxu0 0
    %776 = vmatprep.subr.bf16.mxu0 0
    %777 = vmatpush1.bf16.msra.mxu0 0
    %778 = vmatprep.subr.bf16.mxu0 0
    %779 = vmatpush1.bf16.msra.mxu0 0
    %780 = vmatprep.subr.bf16.mxu0 0
    %781 = vmatpush1.bf16.msra.mxu0 0
    %782 = vmatprep.mubr.bf16.mxu0 0
    %783 = vmatmul.mubr.bf16.gmra.mrb[0].mxu0 %v748
    %v784 = vpop.f32.mrb[0].mxu0
    %v785 = vadd.f32 %v731, %v784
    %v786 = vpop.f32.mrb[0].mxu0
    %v787 = vpop.f32.mrb[0].mxu0
    %v788 = vadd.f32 %v731, %v787
    %v789 = vpop.f32.mrb[0].mxu0
    %790 = vdwg.mxu0
    %v791 = vmax.f32 %v785, 0.0
    %v792 = vmax.f32 %v788, 0.0
    %v793 = vpack.c.bf16 %v792, %v791
    %s794 = scalar_lea.vmem %s9, 32
    %v795 = vld [vmem:[%s794] sm:$0xf]
    %v796 = vld [vmem:[%s794 + $0x4] sm:$0xf]
    %v797 = vld [vmem:[%s794 + $0x8] sm:$0xf]
    %v798 = vld [vmem:[%s794 + $0xc] sm:$0xf]
    %v799 = vld [vmem:[%s794 + $0x10] sm:$0xf]
    %v800 = vld [vmem:[%s794 + $0x14] sm:$0xf]
    %v801 = vld [vmem:[%s794 + $0x18] sm:$0xf]
    %v802 = vld [vmem:[%s794 + $0x1c] sm:$0xf]
    %v803 = vld [vmem:[%s12 + $0x3] sm:$0x1]
    %v804 = vlaneseq
    %v805 = vshrl.u32 %v804, 7
    %v806 = vsub.s32 0, %v805
    %v807 = vrot.slane %v803, %v806
    %v816 = vunpack.c.l.b16 %v795
    %v817 = vunpack.c.l.b16 %v796
    %v818 = vunpack.c.l.b16 %v797
    %v819 = vunpack.c.l.b16 %v798
    %v820 = vunpack.c.l.b16 %v799
    %v821 = vunpack.c.l.b16 %v800
    %v822 = vunpack.c.l.b16 %v801
    %v823 = vunpack.c.l.b16 %v802
    %v824 = vpack.c.b16 %v817, %v816
    %v825 = vpack.c.b16 %v819, %v818
    %v826 = vpack.c.b16 %v821, %v820
    %v827 = vpack.c.b16 %v823, %v822
    %v833 = vsel %vm500, %v793, 0
    %835 = vmatprep.subr.bf16.mxu0 0
    %836 = vmatpush1.bf16.msra.mxu0 %v824
    %837 = vmatprep.subr.bf16.mxu0 0
    %838 = vmatpush1.bf16.msra.mxu0 %v825
    %839 = vmatprep.subr.bf16.mxu0 0
    %840 = vmatpush1.bf16.msra.mxu0 %v826
    %841 = vmatprep.subr.bf16.mxu0 0
    %842 = vmatpush1.bf16.msra.mxu0 %v827
    %843 = vmatprep.subr.bf16.mxu0 0
    %844 = vmatpush1.bf16.msra.mxu0 0
    %845 = vmatprep.subr.bf16.mxu0 0
    %846 = vmatpush1.bf16.msra.mxu0 0
    %847 = vmatprep.subr.bf16.mxu0 0
    %848 = vmatpush1.bf16.msra.mxu0 0
    %849 = vmatprep.subr.bf16.mxu0 0
    %850 = vmatpush1.bf16.msra.mxu0 0
    %851 = vmatprep.subr.bf16.mxu0 0
    %852 = vmatpush1.bf16.msra.mxu0 0
    %853 = vmatprep.subr.bf16.mxu0 0
    %854 = vmatpush1.bf16.msra.mxu0 0
    %855 = vmatprep.subr.bf16.mxu0 0
    %856 = vmatpush1.bf16.msra.mxu0 0
    %857 = vmatprep.subr.bf16.mxu0 0
    %858 = vmatpush1.bf16.msra.mxu0 0
    %859 = vmatprep.subr.bf16.mxu0 0
    %860 = vmatpush1.bf16.msra.mxu0 0
    %861 = vmatprep.subr.bf16.mxu0 0
    %862 = vmatpush1.bf16.msra.mxu0 0
    %863 = vmatprep.subr.bf16.mxu0 0
    %864 = vmatpush1.bf16.msra.mxu0 0
    %865 = vmatprep.subr.bf16.mxu0 0
    %866 = vmatpush1.bf16.msra.mxu0 0
    %867 = vmatprep.mubr.bf16.mxu0 0
    %868 = vmatmul.mubr.bf16.gmra.mrb[0].mxu0 %v833
    %v869 = vpop.f32.mrb[0].mxu0
    %v870 = vadd.f32 %v807, %v869
    %v871 = vpop.f32.mrb[0].mxu0
    %v872 = vpop.f32.mrb[0].mxu0
    %v873 = vadd.f32 %v807, %v872
    %v874 = vpop.f32.mrb[0].mxu0
    %875 = vdwg.mxu0
    %v876 = vmax.f32 %v870, 0.0
    %v877 = vmax.f32 %v873, 0.0
    %v878 = vpack.c.bf16 %v877, %v876
    %879 = vmatprep.subr.bf16.mxu0 0
    %880 = vmatpush1.bf16.msra.mxu0 %v878
    %881 = vmatprep.subr.bf16.mxu0 0
    %882 = vmatpush1.bf16.msra.mxu0 0
    %883 = vmatprep.subr.bf16.mxu0 0
    %884 = vmatpush1.bf16.msra.mxu0 0
    %885 = vmatprep.subr.bf16.mxu0 0
    %886 = vmatpush1.bf16.msra.mxu0 0
    %887 = vmatprep.subr.bf16.mxu0 0
    %888 = vmatpush1.bf16.msra.mxu0 0
    %889 = vmatprep.subr.bf16.mxu0 0
    %890 = vmatpush1.bf16.msra.mxu0 0
    %891 = vmatprep.subr.bf16.mxu0 0
    %892 = vmatpush1.bf16.msra.mxu0 0
    %893 = vmatprep.subr.bf16.mxu0 0
    %894 = vmatpush1.bf16.msra.mxu0 0
    %895 = vmatprep.subr.bf16.mxu0 0
    %896 = vmatpush1.bf16.msra.mxu0 0
    %897 = vmatprep.subr.bf16.mxu0 0
    %898 = vmatpush1.bf16.msra.mxu0 0
    %899 = vmatprep.subr.bf16.mxu0 0
    %900 = vmatpush1.bf16.msra.mxu0 0
    %901 = vmatprep.subr.bf16.mxu0 0
    %902 = vmatpush1.bf16.msra.mxu0 0
    %903 = vmatprep.subr.bf16.mxu0 0
    %904 = vmatpush1.bf16.msra.mxu0 0
    %905 = vmatprep.subr.bf16.mxu0 0
    %906 = vmatpush1.bf16.msra.mxu0 0
    %907 = vmatprep.subr.bf16.mxu0 0
    %908 = vmatpush1.bf16.msra.mxu0 0
    %909 = vmatprep.subr.bf16.mxu0 0
    %910 = vmatpush1.bf16.msra.mxu0 0
    %911 = vmatprep.mubr.bf16.mxu0 0
    %912 = vmatmul.mubr.bf16.gmra.mrb[0].mxu0 %v204
    %v913 = vpop.f32.mrb[0].mxu0
    %v914 = vadd.f32 %v177, %v913
    %v915 = vpop.f32.mrb[0].mxu0
    %v916 = vpop.f32.mrb[0].mxu0
    %v917 = vadd.f32 %v180, %v916
    %v918 = vpop.f32.mrb[0].mxu0
    %919 = vmatprep.mubr.bf16.mxu0 0
    %920 = vmatmul.mubr.bf16.gmra.mrb[0].mxu0 %v207
    %v921 = vpop.f32.mrb[0].mxu0
    %v922 = vadd.f32 %v185, %v921
    %v923 = vpop.f32.mrb[0].mxu0
    %v924 = vpop.f32.mrb[0].mxu0
    %v925 = vadd.f32 %v188, %v924
    %v926 = vpop.f32.mrb[0].mxu0
    %927 = vdwg.mxu0
    %v928 = vmax.f32 %v914, 0.0
    %v929 = vmax.f32 %v917, 0.0
    %v930 = vmax.f32 %v922, 0.0
    %v931 = vmax.f32 %v925, 0.0
    %v932 = vadd.f32 %v928, 1e-07
    %v933 = vadd.f32 %v929, 1e-07
    %v934 = vadd.f32 %v930, 1e-07
    %v935 = vadd.f32 %v931, 1e-07
    %v936 = vsel %vm266, %v932, -inf
    %v937 = vsel %vm266, %v933, -inf
    %v938 = vsel %vm266, %v934, -inf
    %v939 = vsel %vm266, %v935, -inf
    %v940 = vmax.f32 %v936, %v937
    %v941 = vmax.f32 %v938, %v939
    %v942 = vmax.f32 %v940, %v941
    %v943 = vrot.slane %v942, 4
    %v944 = vmax.f32 %v942, %v943
    %v945 = vrot.slane %v944, 2
    %v946 = vmax.f32 %v944, %v945
    %v947 = vrot.slane %v946, 1
    %v948 = vmax.f32 %v946, %v947
    %v949 = vsub.f32 %v932, %v948
    %v950 = vsub.f32 %v933, %v948
    %v951 = vsub.f32 %v934, %v948
    %v952 = vsub.f32 %v935, %v948
    %v953 = vmul.f32 %v949, 1.442695
    %v954 = vpow.pop %v953
    %v955 = vmul.f32 %v950, 1.442695
    %v956 = vpow.pop %v955
    %v957 = vmul.f32 %v951, 1.442695
    %v958 = vpow.pop %v957
    %v959 = vmul.f32 %v952, 1.442695
    %v960 = vpow.pop %v959
    %v961 = vmul.f32 %v932, %v954
    %v962 = vmul.f32 %v933, %v956
    %v963 = vmul.f32 %v934, %v958
    %v964 = vmul.f32 %v935, %v960
    %969 = vrot.lane.b32.xlu0 %v961, 32
    %v970 = vpop.permute.xlu0 %969
    %971 = vrot.lane.b32.xlu0 %v962, 32
    %v972 = vpop.permute.xlu0 %971
    %973 = vrot.lane.b32.xlu0 %v963, 32
    %v974 = vpop.permute.xlu0 %973
    %975 = vrot.lane.b32.xlu0 %v964, 32
    %v976 = vpop.permute.xlu0 %975
    %v981 = vsel %vm266, %v954, %v970
    %v982 = vsel %vm266, %v956, %v972
    %v983 = vsel %vm266, %v958, %v974
    %v984 = vsel %vm266, %v960, %v976
    %v985 = vpack.c.bf16 %v982, %v981
    %v986 = vpack.c.bf16 %v984, %v983
    %987 = vmatprep.subr.bf16.mxu0 0
    %988 = vmatpush1.bf16.msra.mxu0 %v985
    %989 = vmatprep.subr.bf16.mxu0 0
    %990 = vmatpush1.bf16.msra.mxu0 %v986
    %991 = vmatprep.subr.bf16.mxu0 0
    %992 = vmatpush1.bf16.msra.mxu0 0
    %993 = vmatprep.subr.bf16.mxu0 0
    %994 = vmatpush1.bf16.msra.mxu0 0
    %995 = vmatprep.subr.bf16.mxu0 0
    %996 = vmatpush1.bf16.msra.mxu0 0
    %997 = vmatprep.subr.bf16.mxu0 0
    %998 = vmatpush1.bf16.msra.mxu0 0
    %999 = vmatprep.subr.bf16.mxu0 0
    %1000 = vmatpush1.bf16.msra.mxu0 0
    %1001 = vmatprep.subr.bf16.mxu0 0
    %1002 = vmatpush1.bf16.msra.mxu0 0
    %1003 = vmatprep.subr.bf16.mxu0 0
    %1004 = vmatpush1.bf16.msra.mxu0 0
    %1005 = vmatprep.subr.bf16.mxu0 0
    %1006 = vmatpush1.bf16.msra.mxu0 0
    %1007 = vmatprep.subr.bf16.mxu0 0
    %1008 = vmatpush1.bf16.msra.mxu0 0
    %1009 = vmatprep.subr.bf16.mxu0 0
    %1010 = vmatpush1.bf16.msra.mxu0 0
    %1011 = vmatprep.subr.bf16.mxu0 0
    %1012 = vmatpush1.bf16.msra.mxu0 0
    %1013 = vmatprep.subr.bf16.mxu0 0
    %1014 = vmatpush1.bf16.msra.mxu0 0
    %1015 = vmatprep.subr.bf16.mxu0 0
    %1016 = vmatpush1.bf16.msra.mxu0 0
    %1017 = vmatprep.subr.bf16.mxu0 0
    %1018 = vmatpush1.bf16.msra.mxu0 0
    %1019 = vmatprep.mubr.bf16.mxu0 0
    %1020 = vmatmul.mubr.bf16.gmra.mrb[0].mxu0 %v324
    %v1021 = vpop.f32.mrb[0].mxu0
    %v1022 = vadd.f32 0.0, %v1021
    %v1023 = vpop.f32.mrb[0].mxu0
    %v1024 = vpop.f32.mrb[0].mxu0
    %v1025 = vadd.f32 0.0, %v1024
    %v1026 = vpop.f32.mrb[0].mxu0
    %1027 = vdwg.mxu0
    %v1028 = vmax.f32 %v1022, 1e-07
    %v1029 = vmax.f32 %v1025, 1e-07
    %v1030 = vrcp.pop %v1028
    %v1031 = vrcp.pop %v1029
    %1034 = vrot.lane.b32.xlu0 %v1030, 32
    %v1035 = vpop.permute.xlu0 %1034
    %1036 = vrot.lane.b32.xlu0 %v1031, 32
    %v1037 = vpop.permute.xlu0 %1036
    %v1040 = vmul.f32 %v1022, %v1035
    %v1041 = vmul.f32 %v1025, %v1037
    %1044 = vrot.lane.b32.xlu0 %v876, 32
    %v1045 = vpop.permute.xlu0 %1044
    %1046 = vrot.lane.b32.xlu0 %v877, 32
    %v1047 = vpop.permute.xlu0 %1046
    %v1050 = vadd.f32 %v1040, %v1045
    %v1051 = vadd.f32 %v1041, %v1047
    %v1052 = vpack.c.bf16 %v1051, %v1050
    %s1053 = scalar_lea.vmem %s8, 32
    %v1054 = vld [vmem:[%s1053] sm:$0xf]
    %v1055 = vld [vmem:[%s1053 + $0x4] sm:$0xf]
    %v1056 = vld [vmem:[%s1053 + $0x8] sm:$0xf]
    %v1057 = vld [vmem:[%s1053 + $0xc] sm:$0xf]
    %v1058 = vld [vmem:[%s13 + $0x2] sm:$0x1]
    %v1059 = vlaneseq
    %v1060 = vshrl.u32 %v1059, 7
    %v1061 = vsub.s32 0, %v1060
    %v1062 = vrot.slane %v1058, %v1061
    %1064 = vrot.lane.b32.xlu0 %v1052, 96
    %v1065 = vpop.permute.xlu0 %1064
    %v1070 = vunpack.c.l.b16 %v1054
    %v1071 = vunpack.c.l.b16 %v1055
    %v1072 = vunpack.c.l.b16 %v1056
    %v1073 = vunpack.c.l.b16 %v1057
    %v1074 = vpack.c.b16 %v1071, %v1070
    %v1075 = vpack.c.b16 %v1073, %v1072
    %v1079 = vsel %vm266, %v1065, 0
    %1081 = vmatprep.subr.bf16.mxu0 0
    %1082 = vmatpush1.bf16.msra.mxu0 %v1074
    %1083 = vmatprep.subr.bf16.mxu0 0
    %1084 = vmatpush1.bf16.msra.mxu0 %v1075
    %1085 = vmatprep.subr.bf16.mxu0 0
    %1086 = vmatpush1.bf16.msra.mxu0 0
    %1087 = vmatprep.subr.bf16.mxu0 0
    %1088 = vmatpush1.bf16.msra.mxu0 0
    %1089 = vmatprep.subr.bf16.mxu0 0
    %1090 = vmatpush1.bf16.msra.mxu0 0
    %1091 = vmatprep.subr.bf16.mxu0 0
    %1092 = vmatpush1.bf16.msra.mxu0 0
    %1093 = vmatprep.subr.bf16.mxu0 0
    %1094 = vmatpush1.bf16.msra.mxu0 0
    %1095 = vmatprep.subr.bf16.mxu0 0
    %1096 = vmatpush1.bf16.msra.mxu0 0
    %1097 = vmatprep.subr.bf16.mxu0 0
    %1098 = vmatpush1.bf16.msra.mxu0 0
    %1099 = vmatprep.subr.bf16.mxu0 0
    %1100 = vmatpush1.bf16.msra.mxu0 0
    %1101 = vmatprep.subr.bf16.mxu0 0
    %1102 = vmatpush1.bf16.msra.mxu0 0
    %1103 = vmatprep.subr.bf16.mxu0 0
    %1104 = vmatpush1.bf16.msra.mxu0 0
    %1105 = vmatprep.subr.bf16.mxu0 0
    %1106 = vmatpush1.bf16.msra.mxu0 0
    %1107 = vmatprep.subr.bf16.mxu0 0
    %1108 = vmatpush1.bf16.msra.mxu0 0
    %1109 = vmatprep.subr.bf16.mxu0 0
    %1110 = vmatpush1.bf16.msra.mxu0 0
    %1111 = vmatprep.subr.bf16.mxu0 0
    %1112 = vmatpush1.bf16.msra.mxu0 0
    %1113 = vmatprep.mubr.bf16.mxu0 0
    %1114 = vmatmul.mubr.bf16.gmra.mrb[0].mxu0 %v1079
    %v1115 = vpop.f32.mrb[0].mxu0
    %v1116 = vadd.f32 %v1062, %v1115
    %v1117 = vpop.f32.mrb[0].mxu0
    %v1118 = vpop.f32.mrb[0].mxu0
    %v1119 = vadd.f32 %v1062, %v1118
    %v1120 = vpop.f32.mrb[0].mxu0
    %1121 = vdwg.mxu0
    %v1122 = vmax.f32 %v1116, 0.0
    %v1123 = vmax.f32 %v1119, 0.0
    %v1124 = vpack.c.bf16 %v1123, %v1122
    %s1125 = scalar_lea.vmem %s9, 64
    %v1126 = vld [vmem:[%s1125] sm:$0xf]
    %v1127 = vld [vmem:[%s1125 + $0x4] sm:$0xf]
    %v1128 = vld [vmem:[%s1125 + $0x8] sm:$0xf]
    %v1129 = vld [vmem:[%s1125 + $0xc] sm:$0xf]
    %v1130 = vld [vmem:[%s1125 + $0x10] sm:$0xf]
    %v1131 = vld [vmem:[%s1125 + $0x14] sm:$0xf]
    %v1132 = vld [vmem:[%s1125 + $0x18] sm:$0xf]
    %v1133 = vld [vmem:[%s1125 + $0x1c] sm:$0xf]
    %v1134 = vld [vmem:[%s12 + $0x4] sm:$0x1]
    %v1135 = vlaneseq
    %v1136 = vshrl.u32 %v1135, 7
    %v1137 = vsub.s32 0, %v1136
    %v1138 = vrot.slane %v1134, %v1137
    %v1147 = vunpack.c.l.b16 %v1126
    %v1148 = vunpack.c.l.b16 %v1127
    %v1149 = vunpack.c.l.b16 %v1128
    %v1150 = vunpack.c.l.b16 %v1129
    %v1151 = vunpack.c.l.b16 %v1130
    %v1152 = vunpack.c.l.b16 %v1131
    %v1153 = vunpack.c.l.b16 %v1132
    %v1154 = vunpack.c.l.b16 %v1133
    %v1155 = vpack.c.b16 %v1148, %v1147
    %v1156 = vpack.c.b16 %v1150, %v1149
    %v1157 = vpack.c.b16 %v1152, %v1151
    %v1158 = vpack.c.b16 %v1154, %v1153
    %v1164 = vsel %vm500, %v1124, 0
    %1166 = vmatprep.subr.bf16.mxu0 0
    %1167 = vmatpush1.bf16.msra.mxu0 %v1155
    %1168 = vmatprep.subr.bf16.mxu0 0
    %1169 = vmatpush1.bf16.msra.mxu0 %v1156
    %1170 = vmatprep.subr.bf16.mxu0 0
    %1171 = vmatpush1.bf16.msra.mxu0 %v1157
    %1172 = vmatprep.subr.bf16.mxu0 0
    %1173 = vmatpush1.bf16.msra.mxu0 %v1158
    %1174 = vmatprep.subr.bf16.mxu0 0
    %1175 = vmatpush1.bf16.msra.mxu0 0
    %1176 = vmatprep.subr.bf16.mxu0 0
    %1177 = vmatpush1.bf16.msra.mxu0 0
    %1178 = vmatprep.subr.bf16.mxu0 0
    %1179 = vmatpush1.bf16.msra.mxu0 0
    %1180 = vmatprep.subr.bf16.mxu0 0
    %1181 = vmatpush1.bf16.msra.mxu0 0
    %1182 = vmatprep.subr.bf16.mxu0 0
    %1183 = vmatpush1.bf16.msra.mxu0 0
    %1184 = vmatprep.subr.bf16.mxu0 0
    %1185 = vmatpush1.bf16.msra.mxu0 0
    %1186 = vmatprep.subr.bf16.mxu0 0
    %1187 = vmatpush1.bf16.msra.mxu0 0
    %1188 = vmatprep.subr.bf16.mxu0 0
    %1189 = vmatpush1.bf16.msra.mxu0 0
    %1190 = vmatprep.subr.bf16.mxu0 0
    %1191 = vmatpush1.bf16.msra.mxu0 0
    %1192 = vmatprep.subr.bf16.mxu0 0
    %1193 = vmatpush1.bf16.msra.mxu0 0
    %1194 = vmatprep.subr.bf16.mxu0 0
    %1195 = vmatpush1.bf16.msra.mxu0 0
    %1196 = vmatprep.subr.bf16.mxu0 0
    %1197 = vmatpush1.bf16.msra.mxu0 0
    %1198 = vmatprep.mubr.bf16.mxu0 0
    %1199 = vmatmul.mubr.bf16.gmra.mrb[0].mxu0 %v1164
    %v1200 = vpop.f32.mrb[0].mxu0
    %v1201 = vadd.f32 %v1138, %v1200
    %v1202 = vpop.f32.mrb[0].mxu0
    %v1203 = vpop.f32.mrb[0].mxu0
    %v1204 = vadd.f32 %v1138, %v1203
    %v1205 = vpop.f32.mrb[0].mxu0
    %1206 = vdwg.mxu0
    %v1207 = vmax.f32 %v1201, 0.0
    %v1208 = vmax.f32 %v1204, 0.0
    %v1209 = vld [vmem:[%s5] sm:$0x1]
    %v1210 = vpack.c.bf16 %v1208, %v1207
    %v1212 = vsel %vm202, %v1209, 0
    %1214 = vmatprep.subr.bf16.mxu0 0
    %1215 = vmatpush1.bf16.msra.mxu0 %v1210
    %1216 = vmatprep.subr.bf16.mxu0 0
    %1217 = vmatpush1.bf16.msra.mxu0 0
    %1218 = vmatprep.subr.bf16.mxu0 0
    %1219 = vmatpush1.bf16.msra.mxu0 0
    %1220 = vmatprep.subr.bf16.mxu0 0
    %1221 = vmatpush1.bf16.msra.mxu0 0
    %1222 = vmatprep.subr.bf16.mxu0 0
    %1223 = vmatpush1.bf16.msra.mxu0 0
    %1224 = vmatprep.subr.bf16.mxu0 0
    %1225 = vmatpush1.bf16.msra.mxu0 0
    %1226 = vmatprep.subr.bf16.mxu0 0
    %1227 = vmatpush1.bf16.msra.mxu0 0
    %1228 = vmatprep.subr.bf16.mxu0 0
    %1229 = vmatpush1.bf16.msra.mxu0 0
    %1230 = vmatprep.subr.bf16.mxu0 0
    %1231 = vmatpush1.bf16.msra.mxu0 0
    %1232 = vmatprep.subr.bf16.mxu0 0
    %1233 = vmatpush1.bf16.msra.mxu0 0
    %1234 = vmatprep.subr.bf16.mxu0 0
    %1235 = vmatpush1.bf16.msra.mxu0 0
    %1236 = vmatprep.subr.bf16.mxu0 0
    %1237 = vmatpush1.bf16.msra.mxu0 0
    %1238 = vmatprep.subr.bf16.mxu0 0
    %1239 = vmatpush1.bf16.msra.mxu0 0
    %1240 = vmatprep.subr.bf16.mxu0 0
    %1241 = vmatpush1.bf16.msra.mxu0 0
    %1242 = vmatprep.subr.bf16.mxu0 0
    %1243 = vmatpush1.bf16.msra.mxu0 0
    %1244 = vmatprep.subr.bf16.mxu0 0
    %1245 = vmatpush1.bf16.msra.mxu0 0
    %1246 = vmatprep.mubr.bf16.mxu0 0
    %1247 = vmatmul.mubr.bf16.gmra.mrb[0].mxu0 %v1212
    %v1248 = vpop.f32.mrb[0].mxu0
    %v1249 = vadd.f32 0.0, %v1248
    %v1250 = vpop.f32.mrb[0].mxu0
    %v1251 = vpop.f32.mrb[0].mxu0
    %v1252 = vpop.f32.mrb[0].mxu0
    %1253 = vdwg.mxu0
    %v1254 = vld [vmem:[%s6] sm:$0x3]
    %1256 = vset.pattern.permute.xlu0 0
    %1257 = vperm.xlu0 %1256, %v1254
    %v1258 = vpop.permute.xlu0 %1257
    %v1260 = vmul.f32 %v1249, %v1258
    %v1261 = vld [vmem:[%s2] sm:$0x3]
    %1263 = vrot.lane.b32.xlu0 %v1261, 32
    %v1264 = vpop.permute.xlu0 %1263
    %v1266 = vsel %vm266, %v1260, %v1264
    %v1267 = vpack.c.bf16 %v1266, %v1266
    %v1268 = vld [vmem:[%s10] sm:$0xf]
    %v1269 = vld [vmem:[%s10 + $0x4] sm:$0xf]
    %v1270 = vld [vmem:[%s10 + $0x8] sm:$0xf]
    %v1271 = vld [vmem:[%s10 + $0xc] sm:$0xf]
    %v1272 = vld [vmem:[%s10 + $0x10] sm:$0x3]
    %v1273 = vld [vmem:[%s14] sm:$0x1]
    %v1274 = vlaneseq
    %v1275 = vshrl.u32 %v1274, 7
    %v1276 = vsub.s32 0, %v1275
    %v1277 = vrot.slane %v1273, %v1276
    %v1283 = vunpack.c.l.b16 %v1268
    %v1284 = vunpack.c.l.b16 %v1269
    %v1285 = vunpack.c.l.b16 %v1270
    %v1286 = vunpack.c.l.b16 %v1271
    %v1287 = vunpack.c.l.b16 %v1272
    %v1288 = vpack.c.b16 %v1284, %v1283
    %v1289 = vpack.c.b16 %v1286, %v1285
    %v1290 = vpack.c.b16 %v1287, %v1287
    %vm1293 = vcmask 285696
    %v1295 = vsel %vm1293, %v1267, 0
    %vm1297 = vcmask 1040384
    %v1298 = vsel %vm1297, 4294967295, 65535
    %v1299 = vsel %vm138, %v1298, 0
    %v1301 = vand.u32 %v1290, %v1299
    %1303 = vmatprep.subr.bf16.mxu0 0
    %1304 = vmatpush1.bf16.msra.mxu0 %v1288
    %1305 = vmatprep.subr.bf16.mxu0 0
    %1306 = vmatpush1.bf16.msra.mxu0 %v1289
    %1307 = vmatprep.subr.bf16.mxu0 0
    %1308 = vmatpush1.bf16.msra.mxu0 %v1301
    %1309 = vmatprep.subr.bf16.mxu0 0
    %1310 = vmatpush1.bf16.msra.mxu0 0
    %1311 = vmatprep.subr.bf16.mxu0 0
    %1312 = vmatpush1.bf16.msra.mxu0 0
    %1313 = vmatprep.subr.bf16.mxu0 0
    %1314 = vmatpush1.bf16.msra.mxu0 0
    %1315 = vmatprep.subr.bf16.mxu0 0
    %1316 = vmatpush1.bf16.msra.mxu0 0
    %1317 = vmatprep.subr.bf16.mxu0 0
    %1318 = vmatpush1.bf16.msra.mxu0 0
    %1319 = vmatprep.subr.bf16.mxu0 0
    %1320 = vmatpush1.bf16.msra.mxu0 0
    %1321 = vmatprep.subr.bf16.mxu0 0
    %1322 = vmatpush1.bf16.msra.mxu0 0
    %1323 = vmatprep.subr.bf16.mxu0 0
    %1324 = vmatpush1.bf16.msra.mxu0 0
    %1325 = vmatprep.subr.bf16.mxu0 0
    %1326 = vmatpush1.bf16.msra.mxu0 0
    %1327 = vmatprep.subr.bf16.mxu0 0
    %1328 = vmatpush1.bf16.msra.mxu0 0
    %1329 = vmatprep.subr.bf16.mxu0 0
    %1330 = vmatpush1.bf16.msra.mxu0 0
    %1331 = vmatprep.subr.bf16.mxu0 0
    %1332 = vmatpush1.bf16.msra.mxu0 0
    %1333 = vmatprep.subr.bf16.mxu0 0
    %1334 = vmatpush1.bf16.msra.mxu0 0
    %1335 = vmatprep.mubr.bf16.mxu0 0
    %1336 = vmatmul.mubr.bf16.gmra.mrb[0].mxu0 %v1295
    %v1337 = vpop.f32.mrb[0].mxu0
    %v1338 = vadd.f32 %v1277, %v1337
    %v1339 = vpop.f32.mrb[0].mxu0
    %v1340 = vpop.f32.mrb[0].mxu0
    %v1341 = vpop.f32.mrb[0].mxu0
    %1342 = vdwg.mxu0
    %v1343 = vmax.f32 %v1338, 0.0
    %v1344 = vpack.c.bf16 %v1343, %v1343
    %v1345 = vld [vmem:[%s10 + $0x10] sm:$0xe]
    %v1346 = vld [vmem:[%s10 + $0x14] sm:$0xf]
    %v1347 = vld [vmem:[%s10 + $0x18] sm:$0xf]
    %v1348 = vld [vmem:[%s10 + $0x1c] sm:$0xf]
    %v1349 = vld [vmem:[%s10 + $0x20] sm:$0x3]
    %v1350 = vld [vmem:[%s14 + $0x1] sm:$0x1]
    %v1351 = vlaneseq
    %v1352 = vshrl.u32 %v1351, 7
    %v1353 = vsub.s32 0, %v1352
    %v1354 = vrot.slane %v1350, %v1353
    %v1360 = vunpack.c.l.b16 %v1345
    %v1361 = vunpack.c.l.b16 %v1346
    %v1362 = vunpack.c.l.b16 %v1347
    %v1363 = vunpack.c.l.b16 %v1348
    %v1364 = vunpack.c.l.b16 %v1349
    %v1365 = vpack.c.b16 %v1361, %v1360
    %v1366 = vpack.c.b16 %v1363, %v1362
    %v1367 = vpack.c.b16 %v1364, %v1364
    %vm1368 = vsmask.f32 6400
    %v1370 = vshrl.u32 %v1365, 16
    %v1372 = vrot.slane %v1370, 1
    %v1373 = vshll.u32 %v1365, 16
    %v1375 = vrot.slane %v1373, 2
    %v1376 = vor.u32 %v1372, %v1375
    %v1378 = vshrl.u32 %v1366, 16
    %v1380 = vrot.slane %v1378, 1
    %v1381 = vshll.u32 %v1366, 16
    %v1383 = vrot.slane %v1381, 2
    %v1384 = vor.u32 %v1380, %v1383
    %v1385 = vsel %vm1368, %v1376, %v1384
    %v1387 = vshrl.u32 %v1367, 16
    %v1389 = vrot.slane %v1387, 1
    %v1390 = vshll.u32 %v1367, 16
    %v1392 = vrot.slane %v1390, 2
    %v1393 = vor.u32 %v1389, %v1392
    %v1394 = vsel %vm1368, %v1384, %v1393
    %v1398 = vsel %vm266, %v1344, 0
    %1400 = vmatprep.subr.bf16.mxu0 0
    %1401 = vmatpush1.bf16.msra.mxu0 %v1385
    %1402 = vmatprep.subr.bf16.mxu0 0
    %1403 = vmatpush1.bf16.msra.mxu0 %v1394
    %1404 = vmatprep.subr.bf16.mxu0 0
    %1405 = vmatpush1.bf16.msra.mxu0 0
    %1406 = vmatprep.subr.bf16.mxu0 0
    %1407 = vmatpush1.bf16.msra.mxu0 0
    %1408 = vmatprep.subr.bf16.mxu0 0
    %1409 = vmatpush1.bf16.msra.mxu0 0
    %1410 = vmatprep.subr.bf16.mxu0 0
    %1411 = vmatpush1.bf16.msra.mxu0 0
    %1412 = vmatprep.subr.bf16.mxu0 0
    %1413 = vmatpush1.bf16.msra.mxu0 0
    %1414 = vmatprep.subr.bf16.mxu0 0
    %1415 = vmatpush1.bf16.msra.mxu0 0
    %1416 = vmatprep.subr.bf16.mxu0 0
    %1417 = vmatpush1.bf16.msra.mxu0 0
    %1418 = vmatprep.subr.bf16.mxu0 0
    %1419 = vmatpush1.bf16.msra.mxu0 0
    %1420 = vmatprep.subr.bf16.mxu0 0
    %1421 = vmatpush1.bf16.msra.mxu0 0
    %1422 = vmatprep.subr.bf16.mxu0 0
    %1423 = vmatpush1.bf16.msra.mxu0 0
    %1424 = vmatprep.subr.bf16.mxu0 0
    %1425 = vmatpush1.bf16.msra.mxu0 0
    %1426 = vmatprep.subr.bf16.mxu0 0
    %1427 = vmatpush1.bf16.msra.mxu0 0
    %1428 = vmatprep.subr.bf16.mxu0 0
    %1429 = vmatpush1.bf16.msra.mxu0 0
    %1430 = vmatprep.subr.bf16.mxu0 0
    %1431 = vmatpush1.bf16.msra.mxu0 0
    %1432 = vmatprep.mubr.bf16.mxu0 0
    %1433 = vmatmul.mubr.bf16.gmra.mrb[0].mxu0 %v1398
    %v1434 = vpop.f32.mrb[0].mxu0
    %v1435 = vadd.f32 %v1354, %v1434
    %v1436 = vpop.f32.mrb[0].mxu0
    %v1437 = vpop.f32.mrb[0].mxu0
    %v1438 = vpop.f32.mrb[0].mxu0
    %1439 = vdwg.mxu0
    %v1440 = vmax.f32 %v1435, 0.0
    %v1441 = vpack.c.bf16 %v1440, %v1440
    %v1442 = vld [vmem:[%s11] sm:$0xf]
    %v1443 = vld [vmem:[%s11 + $0x4] sm:$0xf]
    %v1444 = vld [vmem:[%s11 + $0x8] sm:$0xf]
    %v1445 = vld [vmem:[%s11 + $0xc] sm:$0xf]
    %v1446 = vld [vmem:[%s15] sm:$0x1]
    %v1448 = vlaneseq
    %v1449 = vshrl.u32 %v1448, 7
    %v1450 = vsub.s32 0, %v1449
    %v1451 = vrot.slane %v1446, %v1450
    %v1457 = vunpack.c.l.b16 %v1442
    %v1458 = vunpack.c.l.b16 %v1443
    %v1459 = vunpack.c.l.b16 %v1444
    %v1460 = vunpack.c.l.b16 %v1445
    %v1461 = vpack.c.b16 %v1458, %v1457
    %v1462 = vpack.c.b16 %v1460, %v1459
    %v1466 = vsel %vm266, %v1441, 0
    %1468 = vmatprep.subr.bf16.mxu0 0
    %1469 = vmatpush1.bf16.msra.mxu0 %v1461
    %1470 = vmatprep.subr.bf16.mxu0 0
    %1471 = vmatpush1.bf16.msra.mxu0 %v1462
    %1472 = vmatprep.subr.bf16.mxu0 0
    %1473 = vmatpush1.bf16.msra.mxu0 0
    %1474 = vmatprep.subr.bf16.mxu0 0
    %1475 = vmatpush1.bf16.msra.mxu0 0
    %1476 = vmatprep.subr.bf16.mxu0 0
    %1477 = vmatpush1.bf16.msra.mxu0 0
    %1478 = vmatprep.subr.bf16.mxu0 0
    %1479 = vmatpush1.bf16.msra.mxu0 0
    %1480 = vmatprep.subr.bf16.mxu0 0
    %1481 = vmatpush1.bf16.msra.mxu0 0
    %1482 = vmatprep.subr.bf16.mxu0 0
    %1483 = vmatpush1.bf16.msra.mxu0 0
    %1484 = vmatprep.subr.bf16.mxu0 0
    %1485 = vmatpush1.bf16.msra.mxu0 0
    %1486 = vmatprep.subr.bf16.mxu0 0
    %1487 = vmatpush1.bf16.msra.mxu0 0
    %1488 = vmatprep.subr.bf16.mxu0 0
    %1489 = vmatpush1.bf16.msra.mxu0 0
    %1490 = vmatprep.subr.bf16.mxu0 0
    %1491 = vmatpush1.bf16.msra.mxu0 0
    %1492 = vmatprep.subr.bf16.mxu0 0
    %1493 = vmatpush1.bf16.msra.mxu0 0
    %1494 = vmatprep.subr.bf16.mxu0 0
    %1495 = vmatpush1.bf16.msra.mxu0 0
    %1496 = vmatprep.subr.bf16.mxu0 0
    %1497 = vmatpush1.bf16.msra.mxu0 0
    %1498 = vmatprep.subr.bf16.mxu0 0
    %1499 = vmatpush1.bf16.msra.mxu0 0
    %1500 = vmatprep.mubr.bf16.mxu0 0
    %1501 = vmatmul.mubr.bf16.gmra.mrb[0].mxu0 %v1466
    %v1502 = vpop.f32.mrb[0].mxu0
    %v1503 = vadd.f32 %v1451, %v1502
    %v1504 = vpop.f32.mrb[0].mxu0
    %v1505 = vpop.f32.mrb[0].mxu0
    %v1506 = vpop.f32.mrb[0].mxu0
    %1507 = vdwg.mxu0
    %v1508 = vxor.u32 %v1503, 2147483648
    %v1509 = vmul.f32 %v1508, 1.442695
    %v1510 = vpow.pop %v1509
    %v1511 = vadd.f32 %v1510, 1.0
    %v1512 = vrcp.pop %v1511
    %v1513 = vmul.f32 1.0, %v1512
    %vm1514 = vcmask 9216
    %1515 = vst.msk [vmem:[#allocation2] sm:$0x3] %vm1514, %v1513
    // Predicated region
    $region66: #{tpu_custom_call.1} parent=1 // pred_check
      _
    $region67: #{tpu_custom_call.1} parent=1 // pred_check_branch
      %1517 = sbr.rel (0) target = $region69
    $region68: #{tpu_custom_call.1} parent=1 // pred_region
      %s1519 = ssub.s32 32, 32
      %1520 = vsyncadd [#allocation3], %s1519
      %s1522 = sshll.u32 [#allocation2], 4
      %s1523 = int_to_ptr.vmem [resolvable:$true] %s1522
      %1525 = dma.vmem_to_hbm [thread:$0]  %s1523, 32, %s16, [#allocation3]
    $region69: #{tpu_custom_call.1} parent=1 // pred_fallthru
      _
    // Predicated region
    $region70: #{tpu_custom_call.1} parent=1 // pred_check
      _
    $region71: #{tpu_custom_call.1} parent=1 // pred_check_branch
      %1527 = sbr.rel (0) target = $region73
    $region72: #{tpu_custom_call.1} parent=1 // pred_region
      %1528 = dma.done [#allocation3], 32
    $region73: #{tpu_custom_call.1} parent=1 // pred_fallthru
      _
    %1529 = vsyncpa [#allocation3], 1

</llo_original>
